<compile_context>
chip_gen: v7x
topology: tpu7x:2x2x1
jax: 0.10.0
libtpu: 0.0.40
codegen_flags: <defaults>
</compile_context>

<pallas_src>
import jax
import jax.numpy as jnp
from jax.experimental import pallas as pl
from jax.experimental.pallas import tpu as pltpu

EPS = 1e-5  # nn.BatchNorm1d default eps


def _round_up(x, m):
    return (x + m - 1) // m * m


def mlp_kernel(x_ref, w1_ref, b1_ref, w2_ref, b2_ref, w3_ref, b3_ref, o_ref):
    """One batch tile of the (BN-folded) MLP: Linear+ReLU, Linear+ReLU, head, sigmoid."""
    # In-kernel bf16 cast of the streamed f32 tile (no extra host-side HBM pass).
    x = x_ref[...].astype(w1_ref.dtype)                           # (TB, D_in) bf16

    # --- Block 1: folded Linear(input_dim, 128) -> ReLU ---
    h = jnp.dot(x, w1_ref[...], preferred_element_type=jnp.float32) + b1_ref[...]
    h = jnp.maximum(h, 0.0)
    # TODO(synk): nn.Dropout(0.3) is identity in eval mode; no RNG masking applied.

    # --- Block 2: folded Linear(128, 64 zero-padded to 128) -> ReLU ---
    h = jnp.dot(h.astype(w2_ref.dtype), w2_ref[...],
                preferred_element_type=jnp.float32) + b2_ref[...]
    h = jnp.maximum(h, 0.0)

    # --- Head: Linear(64, 1) -> Sigmoid ---
    # N=1 matmul done on VPU (broadcast-mul) + XLU lane reduction instead of MXU.
    logits = jnp.sum(h * w3_ref[...], axis=-1, keepdims=True) + b3_ref[...]
    o_ref[...] = jax.nn.sigmoid(logits)


def fold_params(raw_params, compute_dtype=jnp.bfloat16, pad_hidden2_to=128):
    """Fold eval-mode BatchNorm into the preceding Linear (in f32), zero-pad the
    second hidden dim to 128 lanes, then cast MXU operands to bf16.
    Returns (w1, b1, w2, b2, w3_row, b3)."""
    (w1, b1, g1, be1, m1, v1,
     w2, b2, g2, be2, m2, v2,
     w3, b3) = raw_params

    def fold(w, b, g, be, m, v):
        s = g * jax.lax.rsqrt(v + EPS)                            # (1, out) f32
        w_f = (w * s).astype(compute_dtype)                       # bf16 MXU operand
        b_f = ((b - m) * s + be).astype(jnp.float32)              # f32 elementwise
        return w_f, b_f

    w1f, b1f = fold(w1, b1, g1, be1, m1, v1)
    w2f, b2f = fold(w2, b2, g2, be2, m2, v2)
    w3_row = w3.reshape(1, -1).astype(jnp.float32)                # (1, h2) used on VPU
    b3f = b3.reshape(1, 1).astype(jnp.float32)

    # Zero-pad h2 (64 -> 128): padded channels produce relu(0) = 0 and get a
    # zero head weight, so results are bit-identical while vregs are full.
    h2 = w2f.shape[1]
    if pad_hidden2_to and pad_hidden2_to > h2:
        pad = pad_hidden2_to - h2
        w2f = jnp.pad(w2f, ((0, 0), (0, pad)))
        b2f = jnp.pad(b2f, ((0, 0), (0, pad)))
        w3_row = jnp.pad(w3_row, ((0, 0), (0, pad)))
    return (w1f, b1f, w2f, b2f, w3_row, b3f)


def _choose_tb(batch, tile_b):
    """256-aligned batch tile; for small B aim for >= 2 grid steps (v7x has 2 TCs)."""
    tb = min(tile_b, _round_up(pl.cdiv(batch, 2), 256))
    tb = min(tb, _round_up(batch, 8))     # never larger than the sublane-padded batch
    return max(tb, 8)


def mlp_classifier_forward(x, folded_params, *, tile_b=4096):
    """x: (B, input_dim) f32 (cast to bf16 in-kernel). folded_params: fold_params output."""
    w1, b1, w2, b2, w3, b3 = folded_params
    B, D = x.shape
    H1, H2 = w1.shape[1], w2.shape[1]

    tb = _choose_tb(B, tile_b)
    grid = (pl.cdiv(B, tb),)              # ragged last block; output stores are masked

    def resident(arr):
        # Same block for every grid step -> stays VMEM-resident across the grid.
        return pl.BlockSpec(arr.shape, lambda i: (0, 0))

    weight_bytes = sum(int(a.size) * a.dtype.itemsize for a in (w1, b1, w2, b2, w3, b3))
    cost = pl.CostEstimate(
        flops=2 * B * (D * H1 + H1 * H2 + H2),
        transcendentals=B,                                         # sigmoid exp
        bytes_accessed=B * D * 4 + B * 4 + weight_bytes)

    # Scoped-VMEM estimate (double-buffered x/out blocks, f32 activations, bf16
    # casts, resident weights). Only override the default when it would not fit
    # v5e's 16 MiB scoped default (e.g. very large tile_b).
    vmem_est = int(1.5 * (2 * tb * D * 4 + 2 * tb * 128 * 4
                          + 2 * tb * max(H1, H2) * 4
                          + tb * (D + H1) * 2 + weight_bytes))
    vmem_limit = vmem_est if vmem_est > (16 << 20) else None

    out = pl.pallas_call(
        mlp_kernel,
        grid=grid,
        in_specs=[
            pl.BlockSpec((tb, D), lambda i: (i, 0)),               # streamed f32 x tiles
            resident(w1), resident(b1),
            resident(w2), resident(b2),
            resident(w3), resident(b3),
        ],
        out_specs=pl.BlockSpec((tb, 1), lambda i: (i, 0)),
        out_shape=jax.ShapeDtypeStruct((B, 1), jnp.float32),
        compiler_params=pltpu.CompilerParams(
            dimension_semantics=("parallel",),                     # pure data-parallel axis
            vmem_limit_bytes=vmem_limit),
        cost_estimate=cost,
    )(x, w1, b1, w2, b2, w3, b3)
    return out


def make_params(key, input_dim, hidden_dims=(128, 64)):
    """Deterministic synthetic parameters matching the PyTorch module's shapes."""
    dims = [input_dim] + list(hidden_dims)
    keys = jax.random.split(key, 16)
    ki = iter(range(16))

    def lin(kin, kb, fan_in, fan_out):
        w = jax.random.normal(kin, (fan_in, fan_out), jnp.float32) * (1.0 / jnp.sqrt(fan_in))
        b = jax.random.normal(kb, (1, fan_out), jnp.float32) * 0.01
        return w, b

    params = []
    for d_in, d_out in zip(dims[:-1], dims[1:]):
        w, b = lin(keys[next(ki)], keys[next(ki)], d_in, d_out)
        gamma = 1.0 + 0.1 * jax.random.normal(keys[next(ki)], (1, d_out), jnp.float32)
        beta = 0.1 * jax.random.normal(keys[next(ki)], (1, d_out), jnp.float32)
        rmean = 0.05 * jax.random.normal(keys[next(ki)], (1, d_out), jnp.float32)
        rvar = 0.5 + jax.random.uniform(keys[next(ki)], (1, d_out), jnp.float32)
        params.extend([w, b, gamma, beta, rmean, rvar])
    w3, b3 = lin(keys[next(ki)], keys[next(ki)], dims[-1], 1)
    params.extend([w3, b3])
    return tuple(params)


def reference_forward(x, raw_params):
    """Pure-f32 JAX reference of the original (unfolded) module in eval mode."""
    (w1, b1, g1, be1, m1, v1,
     w2, b2, g2, be2, m2, v2,
     w3, b3) = raw_params
    h = x @ w1 + b1
    h = (h - m1) * jax.lax.rsqrt(v1 + EPS) * g1 + be1
    h = jnp.maximum(h, 0.0)
    h = h @ w2 + b2
    h = (h - m2) * jax.lax.rsqrt(v2 + EPS) * g2 + be2
    h = jnp.maximum(h, 0.0)
    return jax.nn.sigmoid(h @ w3 + b3)


if __name__ == "__main__":
    # B=300 with tb=256 exercises a 2-step grid (even v7x split) with a ragged
    # last block (44 valid rows, masked writeback).
    B, INPUT_DIM = 300, 32
    key = jax.random.PRNGKey(0)
    kx, kp = jax.random.split(key)
    x = jax.random.normal(kx, (B, INPUT_DIM), jnp.float32)

    raw_params = make_params(kp, INPUT_DIM)
    folded = fold_params(raw_params)

    out = mlp_classifier_forward(x, folded)
    out = jax.block_until_ready(out)

    ref = reference_forward(x, raw_params)
    assert out.shape == (B, 1)
    # bf16 MXU operands with f32 accumulation; tightened vs. the previous 2e-2.
    err = float(jnp.max(jnp.abs(out - ref)))
    assert err < 1e-2, f"max abs err {err}"
    print("KERNEL_OK")
</pallas_src>

<mosaic_0001>
module attributes {stable_mosaic.version = 11 : i64} {
  func.func @mlp_kernel(%arg0: i32, %arg1: memref<256x32xf32, #tpu.memory_space<vmem>>, %arg2: memref<32x128xbf16, #tpu.memory_space<vmem>>, %arg3: memref<1x128xf32, #tpu.memory_space<vmem>>, %arg4: memref<128x128xbf16, #tpu.memory_space<vmem>>, %arg5: memref<1x128xf32, #tpu.memory_space<vmem>>, %arg6: memref<1x128xf32, #tpu.memory_space<vmem>>, %arg7: memref<1x1xf32, #tpu.memory_space<vmem>>, %arg8: memref<256x1xf32, #tpu.memory_space<vmem>>) attributes {dimension_semantics = [#tpu.dimension_semantics<parallel>], iteration_bounds = array<i64: 2>, scalar_prefetch = 0 : i64, scratch_operands = 0 : i64, tpu.core_type = #tpu.core_type<tc>, window_params = [{transform_indices = @transform_0, window_bounds = array<i64: 256, 32>}, {pipeline_mode = #tpu.pipeline_mode<synchronous>, transform_indices = @transform_1, window_bounds = array<i64: 32, 128>}, {pipeline_mode = #tpu.pipeline_mode<synchronous>, transform_indices = @transform_2, window_bounds = array<i64: 1, 128>}, {pipeline_mode = #tpu.pipeline_mode<synchronous>, transform_indices = @transform_3, window_bounds = array<i64: 128, 128>}, {pipeline_mode = #tpu.pipeline_mode<synchronous>, transform_indices = @transform_4, window_bounds = array<i64: 1, 128>}, {pipeline_mode = #tpu.pipeline_mode<synchronous>, transform_indices = @transform_5, window_bounds = array<i64: 1, 128>}, {pipeline_mode = #tpu.pipeline_mode<synchronous>, transform_indices = @transform_6, window_bounds = array<i64: 1, 1>}, {transform_indices = @transform_7, window_bounds = array<i64: 256, 1>}]} {
    %c0 = arith.constant 0 : index
    %c0_0 = arith.constant 0 : index
    %0 = vector.load %arg1[%c0, %c0_0] : memref<256x32xf32, #tpu.memory_space<vmem>>, vector<256x32xf32>
    %1 = arith.truncf %0 : vector<256x32xf32> to vector<256x32xbf16>
    %c0_1 = arith.constant 0 : index
    %c0_2 = arith.constant 0 : index
    %2 = vector.load %arg2[%c0_1, %c0_2] : memref<32x128xbf16, #tpu.memory_space<vmem>>, vector<32x128xbf16>
    %cst = arith.constant dense<0.000000e+00> : vector<256x128xf32>
    %3 = tpu.matmul %1, %2, %cst {dimension_numbers = #tpu.dot_dimension_numbers<[1], [0], [0], [1], [0, 0, 1, 1], [], []>} : vector<256x32xbf16>, vector<32x128xbf16>, vector<256x128xf32> -> vector<256x128xf32>
    %c0_3 = arith.constant 0 : index
    %c0_4 = arith.constant 0 : index
    %4 = vector.load %arg3[%c0_3, %c0_4] : memref<1x128xf32, #tpu.memory_space<vmem>>, vector<1x128xf32>
    %5 = vector.broadcast %4 : vector<1x128xf32> to vector<256x128xf32>
    %6 = arith.addf %3, %5 : vector<256x128xf32>
    %cst_5 = arith.constant 0.000000e+00 : f32
    %7 = vector.broadcast %cst_5 : f32 to vector<256x128xf32>
    %8 = arith.maximumf %6, %7 : vector<256x128xf32>
    %9 = arith.truncf %8 : vector<256x128xf32> to vector<256x128xbf16>
    %c0_6 = arith.constant 0 : index
    %c0_7 = arith.constant 0 : index
    %10 = vector.load %arg4[%c0_6, %c0_7] : memref<128x128xbf16, #tpu.memory_space<vmem>>, vector<128x128xbf16>
    %cst_8 = arith.constant dense<0.000000e+00> : vector<256x128xf32>
    %11 = tpu.matmul %9, %10, %cst_8 {dimension_numbers = #tpu.dot_dimension_numbers<[1], [0], [0], [1], [0, 0, 1, 1], [], []>} : vector<256x128xbf16>, vector<128x128xbf16>, vector<256x128xf32> -> vector<256x128xf32>
    %c0_9 = arith.constant 0 : index
    %c0_10 = arith.constant 0 : index
    %12 = vector.load %arg5[%c0_9, %c0_10] : memref<1x128xf32, #tpu.memory_space<vmem>>, vector<1x128xf32>
    %13 = vector.broadcast %12 : vector<1x128xf32> to vector<256x128xf32>
    %14 = arith.addf %11, %13 : vector<256x128xf32>
    %cst_11 = arith.constant 0.000000e+00 : f32
    %15 = vector.broadcast %cst_11 : f32 to vector<256x128xf32>
    %16 = arith.maximumf %14, %15 : vector<256x128xf32>
    %c0_12 = arith.constant 0 : index
    %c0_13 = arith.constant 0 : index
    %17 = vector.load %arg6[%c0_12, %c0_13] : memref<1x128xf32, #tpu.memory_space<vmem>>, vector<1x128xf32>
    %18 = vector.broadcast %17 : vector<1x128xf32> to vector<256x128xf32>
    %19 = arith.mulf %16, %18 : vector<256x128xf32>
    %cst_14 = arith.constant dense<0.000000e+00> : vector<256xf32>
    %20 = vector.multi_reduction <add>, %19, %cst_14 [1] : vector<256x128xf32> to vector<256xf32>
    %21 = vector.shape_cast %20 : vector<256xf32> to vector<256x1xf32>
    %c0_15 = arith.constant 0 : index
    %c0_16 = arith.constant 0 : index
    %22 = vector.load %arg7[%c0_15, %c0_16] : memref<1x1xf32, #tpu.memory_space<vmem>>, vector<1x1xf32>
    %23 = vector.broadcast %22 : vector<1x1xf32> to vector<256x1xf32>
    %24 = arith.addf %21, %23 : vector<256x1xf32>
    %25 = arith.negf %24 : vector<256x1xf32>
    %26 = math.exp %25 : vector<256x1xf32>
    %cst_17 = arith.constant 1.000000e+00 : f32
    %27 = vector.broadcast %cst_17 : f32 to vector<256x1xf32>
    %28 = arith.addf %27, %26 : vector<256x1xf32>
    %29 = arith.divf %27, %28 : vector<256x1xf32>
    %c0_18 = arith.constant 0 : index
    %c0_19 = arith.constant 0 : index
    %30 = vector.load %arg8[%c0_18, %c0_19] : memref<256x1xf32, #tpu.memory_space<vmem>>, vector<256x1xf32>
    tpu.vector_store %arg8[%c0_18, %c0_19], %29 {strides = array<i32>} : memref<256x1xf32, #tpu.memory_space<vmem>>, vector<256x1xf32>,
    return
  }
  func.func @transform_0(%arg0: i32) -> (i32, i32) {
    %c0_i32 = arith.constant 0 : i32
    %c0_i32_0 = arith.constant 0 : i32
    return %arg0, %c0_i32 : i32, i32
  }
  func.func @transform_1(%arg0: i32) -> (i32, i32) {
    %c0_i32 = arith.constant 0 : i32
    %c0_i32_0 = arith.constant 0 : i32
    %c0_i32_1 = arith.constant 0 : i32
    return %c0_i32, %c0_i32_0 : i32, i32
  }
  func.func @transform_2(%arg0: i32) -> (i32, i32) {
    %c0_i32 = arith.constant 0 : i32
    %c0_i32_0 = arith.constant 0 : i32
    %c0_i32_1 = arith.constant 0 : i32
    return %c0_i32, %c0_i32_0 : i32, i32
  }
  func.func @transform_3(%arg0: i32) -> (i32, i32) {
    %c0_i32 = arith.constant 0 : i32
    %c0_i32_0 = arith.constant 0 : i32
    %c0_i32_1 = arith.constant 0 : i32
    return %c0_i32, %c0_i32_0 : i32, i32
  }
  func.func @transform_4(%arg0: i32) -> (i32, i32) {
    %c0_i32 = arith.constant 0 : i32
    %c0_i32_0 = arith.constant 0 : i32
    %c0_i32_1 = arith.constant 0 : i32
    return %c0_i32, %c0_i32_0 : i32, i32
  }
  func.func @transform_5(%arg0: i32) -> (i32, i32) {
    %c0_i32 = arith.constant 0 : i32
    %c0_i32_0 = arith.constant 0 : i32
    %c0_i32_1 = arith.constant 0 : i32
    return %c0_i32, %c0_i32_0 : i32, i32
  }
  func.func @transform_6(%arg0: i32) -> (i32, i32) {
    %c0_i32 = arith.constant 0 : i32
    %c0_i32_0 = arith.constant 0 : i32
    %c0_i32_1 = arith.constant 0 : i32
    return %c0_i32, %c0_i32_0 : i32, i32
  }
  func.func @transform_7(%arg0: i32) -> (i32, i32) {
    %c0_i32 = arith.constant 0 : i32
    %c0_i32_0 = arith.constant 0 : i32
    return %arg0, %c0_i32 : i32, i32
  }
}

</mosaic_0001>

<llo_original>
// kernel: tpu_custom_call.1
$region0: #{tpu_custom_call.1}
  #allocation0 [shape = 'u32[]', space=smem, size = 0x4, offset = 0x4, fixed_abs, tag = 'smem constant byte address 0x4 - core index']
  #allocation1 [shape = 'u32[144,128]{1,0:T(1,128)}', space=vmem, size = 0x12000, scoped, tag = 'internal scratch']
  #allocation2 [shape = 'f32[1,1]{1,0:T(1,128)S(1)}', space=vmem, size = 0x200, scoped, tag = 'scoped memory for tpu_custom_call.1']
  %s0 = inlined_call_operand.vmem [shape: f32[300,32], index: 0, kind: input, shape index: {}]
  %s1 = inlined_call_operand.vmem [shape: bf16[32,128], index: 1, kind: input, shape index: {}]
  %s2 = inlined_call_operand.vmem [shape: f32[1,128], index: 2, kind: input, shape index: {}]
  %s3 = inlined_call_operand.vmem [shape: bf16[128,128], index: 3, kind: input, shape index: {}]
  %s4 = inlined_call_operand.vmem [shape: f32[1,128], index: 4, kind: input, shape index: {}]
  %s5 = inlined_call_operand.vmem [shape: f32[1,128], index: 5, kind: input, shape index: {}]
  %s6 = inlined_call_operand.<no memory space> [shape: f32[1,1], index: 6, kind: input, shape index: {}]
  %s7 = inlined_call_operand.vmem [shape: f32[300,1], index: 7, kind: output, shape index: {}]
  %s8 = sld [smem:[#allocation0]]
  $region109: #{tpu_custom_call.1} parent=0
    _
  %s10 = ssub.s32 1, %s8
  %s11 = scalar_select 0, %s10, %s8
  %v12 = vstv %s6
  %13 = vst [vmem:[#allocation2] sm:$0x1] %v12
  $region1: #{tpu_custom_call.1} parent=0
    #allocation3 [shape = 'u8[262144]{0}', space=vmem, size = 0x40000, scoped, tag = 'output window, operand 0']
    loop: start=0, step=1, limit=4
    $region2: #{tpu_custom_call.1} parent=1 // loop_pre_header
      _
    $region3: #{tpu_custom_call.1} parent=1 // loop_header
      %s15 = sphi 0, %s19
      %p16 = scmp.ge.s32.totalorder %s15, 4
      %s25 = sphi 0, %s27
      %s28 = sphi 0, %s25
      %s29 = sphi 0, %s28
      %s45 = sphi 0, %s29
      %s49 = sphi 0, %s49
      %s51 = sphi 0, %s49
      %s52 = sphi 0, %s51
      %s66 = sphi 0, %s52
      %s70 = sphi 0, %s70
      %s72 = sphi 0, %s70
      %s73 = sphi 0, %s72
      %s87 = sphi 0, %s73
      %s91 = sphi 0, %s91
      %s93 = sphi 0, %s91
      %s94 = sphi 0, %s93
      %s108 = sphi 0, %s94
      %s112 = sphi 0, %s112
      %s114 = sphi 0, %s112
      %s115 = sphi 0, %s114
      %s129 = sphi 0, %s115
      %s133 = sphi 0, %s133
      %s135 = sphi 0, %s133
      %s136 = sphi 0, %s135
      %s150 = sphi 0, %s136
      %s154 = sphi 0, %s154
      %s156 = sphi 0, %s154
      %s157 = sphi 0, %s156
      %s171 = sphi 0, %s157
      %s177 = sphi 0, %s179
      %s180 = sphi 0, %s177
      %s181 = sphi 0, %s180
      %s197 = sphi 0, %s181
    $region4: #{tpu_custom_call.1} parent=1 // loop_header_branch
      %18 = sbr.rel (%p16) target = $region8
    $region5: #{tpu_custom_call.1} parent=1 // loop_body
      %s20 = ssub.s32 %s15, 1
      %s21 = ssub.s32 %s15, 2
      %s22 = sadd.s32 %s15, 1
      %s23 = ssub.s32 %s15, %s22
      %p24 = scmp.eq.s32.totalorder %s23, 0
      %s26 = sadd.s32 %s25, 1
      %s27 = scalar_select %p24, %s25, %s26
      %p30 = pneg %p24
      %p31 = scmp.eq.s32.totalorder %s15, 1
      %p32 = por %p30, %p31
      %p33 = scmp.ne.s32.totalorder %s25, %s28
      %p34 = scmp.eq.s32.totalorder %s15, 0
      %p35 = por %p33, %p34
      %p36 = scmp.ne.s32.totalorder %s25, %s28
      %p37 = scmp.eq.s32.totalorder %s20, 1
      %p38 = por %p36, %p37
      %p39 = scmp.ne.s32.totalorder %s28, %s29
      %p40 = scmp.eq.s32.totalorder %s20, 0
      %p41 = por %p39, %p40
      %p42 = scmp.ne.s32.totalorder %s28, %s29
      %p43 = scmp.eq.s32.totalorder %s21, 1
      %p44 = por %p42, %p43
      %p46 = scmp.ne.s32.totalorder %s29, %s45
      %p47 = scmp.eq.s32.totalorder %s21, 0
      %p48 = por %p46, %p47
      %s50 = sadd.s32 %s49, 1
      %p53 = scmp.eq.s32.totalorder %s15, 1
      %p54 = scmp.ne.s32.totalorder %s49, %s51
      %p55 = scmp.eq.s32.totalorder %s15, 0
      %p56 = por %p54, %p55
      %p57 = scmp.ne.s32.totalorder %s49, %s51
      %p58 = scmp.eq.s32.totalorder %s20, 1
      %p59 = por %p57, %p58
      %p60 = scmp.ne.s32.totalorder %s51, %s52
      %p61 = scmp.eq.s32.totalorder %s20, 0
      %p62 = por %p60, %p61
      %p63 = scmp.ne.s32.totalorder %s51, %s52
      %p64 = scmp.eq.s32.totalorder %s21, 1
      %p65 = por %p63, %p64
      %p67 = scmp.ne.s32.totalorder %s52, %s66
      %p68 = scmp.eq.s32.totalorder %s21, 0
      %p69 = por %p67, %p68
      %s71 = sadd.s32 %s70, 1
      %p74 = scmp.eq.s32.totalorder %s15, 1
      %p75 = scmp.ne.s32.totalorder %s70, %s72
      %p76 = scmp.eq.s32.totalorder %s15, 0
      %p77 = por %p75, %p76
      %p78 = scmp.ne.s32.totalorder %s70, %s72
      %p79 = scmp.eq.s32.totalorder %s20, 1
      %p80 = por %p78, %p79
      %p81 = scmp.ne.s32.totalorder %s72, %s73
      %p82 = scmp.eq.s32.totalorder %s20, 0
      %p83 = por %p81, %p82
      %p84 = scmp.ne.s32.totalorder %s72, %s73
      %p85 = scmp.eq.s32.totalorder %s21, 1
      %p86 = por %p84, %p85
      %p88 = scmp.ne.s32.totalorder %s73, %s87
      %p89 = scmp.eq.s32.totalorder %s21, 0
      %p90 = por %p88, %p89
      %s92 = sadd.s32 %s91, 1
      %p95 = scmp.eq.s32.totalorder %s15, 1
      %p96 = scmp.ne.s32.totalorder %s91, %s93
      %p97 = scmp.eq.s32.totalorder %s15, 0
      %p98 = por %p96, %p97
      %p99 = scmp.ne.s32.totalorder %s91, %s93
      %p100 = scmp.eq.s32.totalorder %s20, 1
      %p101 = por %p99, %p100
      %p102 = scmp.ne.s32.totalorder %s93, %s94
      %p103 = scmp.eq.s32.totalorder %s20, 0
      %p104 = por %p102, %p103
      %p105 = scmp.ne.s32.totalorder %s93, %s94
      %p106 = scmp.eq.s32.totalorder %s21, 1
      %p107 = por %p105, %p106
      %p109 = scmp.ne.s32.totalorder %s94, %s108
      %p110 = scmp.eq.s32.totalorder %s21, 0
      %p111 = por %p109, %p110
      %s113 = sadd.s32 %s112, 1
      %p116 = scmp.eq.s32.totalorder %s15, 1
      %p117 = scmp.ne.s32.totalorder %s112, %s114
      %p118 = scmp.eq.s32.totalorder %s15, 0
      %p119 = por %p117, %p118
      %p120 = scmp.ne.s32.totalorder %s112, %s114
      %p121 = scmp.eq.s32.totalorder %s20, 1
      %p122 = por %p120, %p121
      %p123 = scmp.ne.s32.totalorder %s114, %s115
      %p124 = scmp.eq.s32.totalorder %s20, 0
      %p125 = por %p123, %p124
      %p126 = scmp.ne.s32.totalorder %s114, %s115
      %p127 = scmp.eq.s32.totalorder %s21, 1
      %p128 = por %p126, %p127
      %p130 = scmp.ne.s32.totalorder %s115, %s129
      %p131 = scmp.eq.s32.totalorder %s21, 0
      %p132 = por %p130, %p131
      %s134 = sadd.s32 %s133, 1
      %p137 = scmp.eq.s32.totalorder %s15, 1
      %p138 = scmp.ne.s32.totalorder %s133, %s135
      %p139 = scmp.eq.s32.totalorder %s15, 0
      %p140 = por %p138, %p139
      %p141 = scmp.ne.s32.totalorder %s133, %s135
      %p142 = scmp.eq.s32.totalorder %s20, 1
      %p143 = por %p141, %p142
      %p144 = scmp.ne.s32.totalorder %s135, %s136
      %p145 = scmp.eq.s32.totalorder %s20, 0
      %p146 = por %p144, %p145
      %p147 = scmp.ne.s32.totalorder %s135, %s136
      %p148 = scmp.eq.s32.totalorder %s21, 1
      %p149 = por %p147, %p148
      %p151 = scmp.ne.s32.totalorder %s136, %s150
      %p152 = scmp.eq.s32.totalorder %s21, 0
      %p153 = por %p151, %p152
      %s155 = sadd.s32 %s154, 1
      %p158 = scmp.eq.s32.totalorder %s15, 1
      %p159 = scmp.ne.s32.totalorder %s154, %s156
      %p160 = scmp.eq.s32.totalorder %s15, 0
      %p161 = por %p159, %p160
      %p162 = scmp.ne.s32.totalorder %s154, %s156
      %p163 = scmp.eq.s32.totalorder %s20, 1
      %p164 = por %p162, %p163
      %p165 = scmp.ne.s32.totalorder %s156, %s157
      %p166 = scmp.eq.s32.totalorder %s20, 0
      %p167 = por %p165, %p166
      %p168 = scmp.ne.s32.totalorder %s156, %s157
      %p169 = scmp.eq.s32.totalorder %s21, 1
      %p170 = por %p168, %p169
      %p172 = scmp.ne.s32.totalorder %s157, %s171
      %p173 = scmp.eq.s32.totalorder %s21, 0
      %p174 = por %p172, %p173
      %s175 = ssub.s32 %s15, %s22
      %p176 = scmp.eq.s32.totalorder %s175, 0
      %s178 = sadd.s32 %s177, 1
      %s179 = scalar_select %p176, %s177, %s178
      %p182 = pneg %p176
      %p183 = scmp.eq.s32.totalorder %s15, 1
      %p184 = por %p182, %p183
      %p185 = scmp.ne.s32.totalorder %s177, %s180
      %p186 = scmp.eq.s32.totalorder %s15, 0
      %p187 = por %p185, %p186
      %p188 = scmp.ne.s32.totalorder %s177, %s180
      %p189 = scmp.eq.s32.totalorder %s20, 1
      %p190 = por %p188, %p189
      %p191 = scmp.ne.s32.totalorder %s180, %s181
      %p192 = scmp.eq.s32.totalorder %s20, 0
      %p193 = por %p191, %p192
      %p194 = scmp.ne.s32.totalorder %s180, %s181
      %p195 = scmp.eq.s32.totalorder %s21, 1
      %p196 = por %p194, %p195
      %p198 = scmp.ne.s32.totalorder %s181, %s197
      %p199 = scmp.eq.s32.totalorder %s21, 0
      %p200 = por %p198, %p199
      %p201 = scmp.le.s32.totalorder 1, %s15
      %p202 = scmp.lt.s32.totalorder %s15, 3
      %p203 = pnand %p201, %p202
      %p204 = pneg %p203
      // Predicated region
      $region9: #{tpu_custom_call.1} parent=5 // pred_check
        _
      $region10: #{tpu_custom_call.1} parent=5 // pred_check_branch
        %206 = sbr.rel (%p203) target = $region12
      $region11: #{tpu_custom_call.1} parent=5 // pred_region
        %s207 = ssub.s32 %s15, 1
        // Predicated region
        $region13: #{tpu_custom_call.1} parent=11 // pred_check
          %p208 = pneg %p62
        $region14: #{tpu_custom_call.1} parent=11 // pred_check_branch
          %210 = sbr.rel (%p208) target = $region16
        $region15: #{tpu_custom_call.1} parent=11 // pred_region
          _
        $region16: #{tpu_custom_call.1} parent=11 // pred_fallthru
          _
        // Predicated region
        $region17: #{tpu_custom_call.1} parent=11 // pred_check
          %p211 = pneg %p83
        $region18: #{tpu_custom_call.1} parent=11 // pred_check_branch
          %213 = sbr.rel (%p211) target = $region20
        $region19: #{tpu_custom_call.1} parent=11 // pred_region
          _
        $region20: #{tpu_custom_call.1} parent=11 // pred_fallthru
          _
        // Predicated region
        $region21: #{tpu_custom_call.1} parent=11 // pred_check
          %p214 = pneg %p104
        $region22: #{tpu_custom_call.1} parent=11 // pred_check_branch
          %216 = sbr.rel (%p214) target = $region24
        $region23: #{tpu_custom_call.1} parent=11 // pred_region
          _
        $region24: #{tpu_custom_call.1} parent=11 // pred_fallthru
          _
        // Predicated region
        $region25: #{tpu_custom_call.1} parent=11 // pred_check
          %p217 = pneg %p125
        $region26: #{tpu_custom_call.1} parent=11 // pred_check_branch
          %219 = sbr.rel (%p217) target = $region28
        $region27: #{tpu_custom_call.1} parent=11 // pred_region
          _
        $region28: #{tpu_custom_call.1} parent=11 // pred_fallthru
          _
        // Predicated region
        $region29: #{tpu_custom_call.1} parent=11 // pred_check
          %p220 = pneg %p146
        $region30: #{tpu_custom_call.1} parent=11 // pred_check_branch
          %222 = sbr.rel (%p220) target = $region32
        $region31: #{tpu_custom_call.1} parent=11 // pred_region
          _
        $region32: #{tpu_custom_call.1} parent=11 // pred_fallthru
          _
        // Predicated region
        $region33: #{tpu_custom_call.1} parent=11 // pred_check
          %p223 = pneg %p167
        $region34: #{tpu_custom_call.1} parent=11 // pred_check_branch
          %225 = sbr.rel (%p223) target = $region36
        $region35: #{tpu_custom_call.1} parent=11 // pred_region
          _
        $region36: #{tpu_custom_call.1} parent=11 // pred_fallthru
          _
      $region12: #{tpu_custom_call.1} parent=5 // pred_fallthru
        _
      %p226 = scmp.lt.s32.totalorder %s15, 2
      // Predicated region
      $region37: #{tpu_custom_call.1} parent=5 // pred_check
        %p227 = pneg %p226
      $region38: #{tpu_custom_call.1} parent=5 // pred_check_branch
        %229 = sbr.rel (%p227) target = $region40
      $region39: #{tpu_custom_call.1} parent=5 // pred_region
        // Predicated region
        $region41: #{tpu_custom_call.1} parent=39 // pred_check
          %p230 = pneg %p35
        $region42: #{tpu_custom_call.1} parent=39 // pred_check_branch
          %232 = sbr.rel (%p230) target = $region44
        $region43: #{tpu_custom_call.1} parent=39 // pred_region
          %s233 = smul.u32 32, %s15
          %s234 = ssub.s32 38, %s233
          %p235 = scmp.lt.s32.totalorder %s234, 32
          %s236 = scalar_select %p235, %s234, 32
          %s237 = smul.u32 128, %s236
          %p238 = scmp.lt.s32.totalorder %s233, 37
          %s239 = scalar_select %p238, %s233, 37
          %s240 = smul.addr %s239, 8
          %s241 = scalar_lea.vmem %s0, %s240
          %s242 = smul.u32 32, %s15
          %s243 = ssub.s32 38, %s242
          %p244 = scmp.lt.s32.totalorder %s243, 32
          %s245 = scalar_select %p244, %s243, 32
          %s246 = smul.u32 128, %s245
        $region44: #{tpu_custom_call.1} parent=39 // pred_fallthru
          _
      $region40: #{tpu_custom_call.1} parent=5 // pred_fallthru
        _
      %p247 = scmp.le.s32.totalorder 1, %s15
      %p248 = scmp.lt.s32.totalorder %s15, 3
      %p249 = pnand %p247, %p248
      %p250 = pneg %p249
      // Predicated region
      $region45: #{tpu_custom_call.1} parent=5 // pred_check
        _
      $region46: #{tpu_custom_call.1} parent=5 // pred_check_branch
        %252 = sbr.rel (%p249) target = $region48
      $region47: #{tpu_custom_call.1} parent=5 // pred_region
        %s253 = ssub.s32 %s15, 1
        %s254 = smul.u32 32, %s20
        %s255 = ssub.s32 38, %s254
        %p256 = scmp.lt.s32.totalorder %s255, 32
        %s257 = scalar_select %p256, %s255, 32
        %s258 = smul.u32 128, %s257
        %p259 = scmp.lt.s32.totalorder %s254, 37
        %s260 = scalar_select %p259, %s254, 37
        %s261 = smul.addr %s260, 8
        %s262 = scalar_lea.vmem %s0, %s261
        %p263 = pneg %p41
        %p264 = pneg %p38
        %p265 = pneg %p62
        %p266 = pneg %p59
        %p267 = pneg %p83
        %p268 = pneg %p80
        %p269 = pneg %p104
        %p270 = pneg %p101
        %p271 = pneg %p125
        %p272 = pneg %p122
        %p273 = pneg %p146
        %p274 = pneg %p143
        %p275 = pneg %p167
        %p276 = pneg %p164
        %p277 = pneg %p193
        %p278 = pneg %p190
        %s279 = sand.u32 %s180, 1
        %s280 = sand.u32 %s180, 1
        %s281 = smul.addr %s280, 256
        %s282 = scalar_lea.vmem [#allocation3], %s281
        %s283 = smul.u32 32, %s20
        %s284 = ssub.s32 38, %s283
        %p285 = scmp.lt.s32.totalorder %s284, 32
        %s286 = scalar_select %p285, %s284, 32
        %s287 = smul.u32 128, %s286
        %p288 = scmp.lt.s32.totalorder %s283, 37
        %s289 = scalar_select %p288, %s283, 37
        %s290 = smul.addr %s289, 8
        %s291 = scalar_lea.vmem %s0, %s290
        %s292 = smul.u32 32, %s20
        %s293 = ssub.s32 38, %s292
        %p294 = scmp.lt.s32.totalorder %s293, 32
        %s295 = scalar_select %p294, %s293, 32
        %s296 = smul.u32 128, %s295
        %s297 = smul.u32 32, %s20
        %s298 = ssub.s32 38, %s297
        %p299 = scmp.lt.s32.totalorder %s298, 32
        %s300 = scalar_select %p299, %s298, 32
        %s301 = smul.u32 128, %s300
        %v303 = vld [vmem:[%s291] sm:$0xff]
        %v304 = vld [vmem:[%s291 + $0x8] sm:$0xff]
        %v305 = vld [vmem:[%s291 + $0x10] sm:$0xff]
        %v306 = vld [vmem:[%s291 + $0x18] sm:$0xff]
        %v307 = vld [vmem:[%s291 + $0x20] sm:$0xff]
        %v308 = vld [vmem:[%s291 + $0x28] sm:$0xff]
        %v309 = vld [vmem:[%s291 + $0x30] sm:$0xff]
        %v310 = vld [vmem:[%s291 + $0x38] sm:$0xff]
        %v311 = vld [vmem:[%s291 + $0x40] sm:$0xff]
        %v312 = vld [vmem:[%s291 + $0x48] sm:$0xff]
        %v313 = vld [vmem:[%s291 + $0x50] sm:$0xff]
        %v314 = vld [vmem:[%s291 + $0x58] sm:$0xff]
        %v315 = vld [vmem:[%s291 + $0x60] sm:$0xff]
        %v316 = vld [vmem:[%s291 + $0x68] sm:$0xff]
        %v317 = vld [vmem:[%s291 + $0x70] sm:$0xff]
        %v318 = vld [vmem:[%s291 + $0x78] sm:$0xff]
        %v319 = vld [vmem:[%s291 + $0x80] sm:$0xff]
        %v320 = vld [vmem:[%s291 + $0x88] sm:$0xff]
        %v321 = vld [vmem:[%s291 + $0x90] sm:$0xff]
        %v322 = vld [vmem:[%s291 + $0x98] sm:$0xff]
        %v323 = vld [vmem:[%s291 + $0xa0] sm:$0xff]
        %v324 = vld [vmem:[%s291 + $0xa8] sm:$0xff]
        %v325 = vld [vmem:[%s291 + $0xb0] sm:$0xff]
        %v326 = vld [vmem:[%s291 + $0xb8] sm:$0xff]
        %v327 = vld [vmem:[%s291 + $0xc0] sm:$0xff]
        %v328 = vld [vmem:[%s291 + $0xc8] sm:$0xff]
        %v329 = vld [vmem:[%s291 + $0xd0] sm:$0xff]
        %v330 = vld [vmem:[%s291 + $0xd8] sm:$0xff]
        %v331 = vld [vmem:[%s291 + $0xe0] sm:$0xff]
        %v332 = vld [vmem:[%s291 + $0xe8] sm:$0xff]
        %v333 = vld [vmem:[%s291 + $0xf0] sm:$0xff]
        %v334 = vld [vmem:[%s291 + $0xf8] sm:$0xff]
        %v335 = vpack.c.bf16 %v304, %v303
        %v336 = vpack.c.bf16 %v306, %v305
        %v337 = vpack.c.bf16 %v308, %v307
        %v338 = vpack.c.bf16 %v310, %v309
        %v339 = vpack.c.bf16 %v312, %v311
        %v340 = vpack.c.bf16 %v314, %v313
        %v341 = vpack.c.bf16 %v316, %v315
        %v342 = vpack.c.bf16 %v318, %v317
        %v343 = vpack.c.bf16 %v320, %v319
        %v344 = vpack.c.bf16 %v322, %v321
        %v345 = vpack.c.bf16 %v324, %v323
        %v346 = vpack.c.bf16 %v326, %v325
        %v347 = vpack.c.bf16 %v328, %v327
        %v348 = vpack.c.bf16 %v330, %v329
        %v349 = vpack.c.bf16 %v332, %v331
        %v350 = vpack.c.bf16 %v334, %v333
        %v351 = vld [vmem:[%s1] sm:$0xf]
        %v352 = vld [vmem:[%s1 + $0x4] sm:$0xf]
        %v353 = vld [vmem:[%s1 + $0x8] sm:$0xf]
        %v354 = vld [vmem:[%s1 + $0xc] sm:$0xf]
        %v355 = vld [vmem:[%s2] sm:$0x1]
        %v357 = vlaneseq
        %v358 = vshrl.u32 %v357, 7
        %v359 = vsub.s32 0, %v358
        %v360 = vrot.slane %v355, %v359
        %v366 = vunpack.c.l.b16 %v351
        %v367 = vunpack.c.l.b16 %v352
        %v368 = vunpack.c.l.b16 %v353
        %v369 = vunpack.c.l.b16 %v354
        %v370 = vpack.c.b16 %v367, %v366
        %v371 = vpack.c.b16 %v369, %v368
        %vm374 = vcmask 261120
        %v376 = vsel %vm374, %v335, 0
        %v379 = vsel %vm374, %v336, 0
        %v382 = vsel %vm374, %v337, 0
        %v385 = vsel %vm374, %v338, 0
        %v388 = vsel %vm374, %v339, 0
        %v391 = vsel %vm374, %v340, 0
        %v394 = vsel %vm374, %v341, 0
        %v397 = vsel %vm374, %v342, 0
        %v400 = vsel %vm374, %v343, 0
        %v403 = vsel %vm374, %v344, 0
        %v406 = vsel %vm374, %v345, 0
        %v409 = vsel %vm374, %v346, 0
        %v412 = vsel %vm374, %v347, 0
        %v415 = vsel %vm374, %v348, 0
        %v418 = vsel %vm374, %v349, 0
        %v421 = vsel %vm374, %v350, 0
        %423 = vmatprep.subr.bf16.mxu0 0
        %424 = vmatpush1.bf16.msra.mxu0 %v370
        %425 = vmatprep.subr.bf16.mxu0 0
        %426 = vmatpush1.bf16.msra.mxu0 %v371
        %427 = vmatprep.subr.bf16.mxu0 0
        %428 = vmatpush1.bf16.msra.mxu0 0
        %429 = vmatprep.subr.bf16.mxu0 0
        %430 = vmatpush1.bf16.msra.mxu0 0
        %431 = vmatprep.subr.bf16.mxu0 0
        %432 = vmatpush1.bf16.msra.mxu0 0
        %433 = vmatprep.subr.bf16.mxu0 0
        %434 = vmatpush1.bf16.msra.mxu0 0
        %435 = vmatprep.subr.bf16.mxu0 0
        %436 = vmatpush1.bf16.msra.mxu0 0
        %437 = vmatprep.subr.bf16.mxu0 0
        %438 = vmatpush1.bf16.msra.mxu0 0
        %439 = vmatprep.subr.bf16.mxu0 0
        %440 = vmatpush1.bf16.msra.mxu0 0
        %441 = vmatprep.subr.bf16.mxu0 0
        %442 = vmatpush1.bf16.msra.mxu0 0
        %443 = vmatprep.subr.bf16.mxu0 0
        %444 = vmatpush1.bf16.msra.mxu0 0
        %445 = vmatprep.subr.bf16.mxu0 0
        %446 = vmatpush1.bf16.msra.mxu0 0
        %447 = vmatprep.subr.bf16.mxu0 0
        %448 = vmatpush1.bf16.msra.mxu0 0
        %449 = vmatprep.subr.bf16.mxu0 0
        %450 = vmatpush1.bf16.msra.mxu0 0
        %451 = vmatprep.subr.bf16.mxu0 0
        %452 = vmatpush1.bf16.msra.mxu0 0
        %453 = vmatprep.subr.bf16.mxu0 0
        %454 = vmatpush1.bf16.msra.mxu0 0
        %455 = vmatprep.mubr.bf16.mxu0 0
        %456 = vmatmul.mubr.bf16.gmra.mrb[0].mxu0 %v376
        %v457 = vpop.f32.mrb[0].mxu0
        %v458 = vadd.f32 %v360, %v457
        %v459 = vpop.f32.mrb[0].mxu0
        %v460 = vpop.f32.mrb[0].mxu0
        %v461 = vadd.f32 %v360, %v460
        %v462 = vpop.f32.mrb[0].mxu0
        %463 = vmatprep.mubr.bf16.mxu0 0
        %464 = vmatmul.mubr.bf16.gmra.mrb[0].mxu0 %v379
        %v465 = vpop.f32.mrb[0].mxu0
        %v466 = vadd.f32 %v360, %v465
        %v467 = vpop.f32.mrb[0].mxu0
        %v468 = vpop.f32.mrb[0].mxu0
        %v469 = vadd.f32 %v360, %v468
        %v470 = vpop.f32.mrb[0].mxu0
        %471 = vmatprep.mubr.bf16.mxu0 0
        %472 = vmatmul.mubr.bf16.gmra.mrb[0].mxu0 %v382
        %v473 = vpop.f32.mrb[0].mxu0
        %v474 = vadd.f32 %v360, %v473
        %v475 = vpop.f32.mrb[0].mxu0
        %v476 = vpop.f32.mrb[0].mxu0
        %v477 = vadd.f32 %v360, %v476
        %v478 = vpop.f32.mrb[0].mxu0
        %479 = vmatprep.mubr.bf16.mxu0 0
        %480 = vmatmul.mubr.bf16.gmra.mrb[0].mxu0 %v385
        %v481 = vpop.f32.mrb[0].mxu0
        %v482 = vadd.f32 %v360, %v481
        %v483 = vpop.f32.mrb[0].mxu0
        %v484 = vpop.f32.mrb[0].mxu0
        %v485 = vadd.f32 %v360, %v484
        %v486 = vpop.f32.mrb[0].mxu0
        %487 = vmatprep.mubr.bf16.mxu0 0
        %488 = vmatmul.mubr.bf16.gmra.mrb[0].mxu0 %v388
        %v489 = vpop.f32.mrb[0].mxu0
        %v490 = vadd.f32 %v360, %v489
        %v491 = vpop.f32.mrb[0].mxu0
        %v492 = vpop.f32.mrb[0].mxu0
        %v493 = vadd.f32 %v360, %v492
        %v494 = vpop.f32.mrb[0].mxu0
        %495 = vmatprep.mubr.bf16.mxu0 0
        %496 = vmatmul.mubr.bf16.gmra.mrb[0].mxu0 %v391
        %v497 = vpop.f32.mrb[0].mxu0
        %v498 = vadd.f32 %v360, %v497
        %v499 = vpop.f32.mrb[0].mxu0
        %v500 = vpop.f32.mrb[0].mxu0
        %v501 = vadd.f32 %v360, %v500
        %v502 = vpop.f32.mrb[0].mxu0
        %503 = vmatprep.mubr.bf16.mxu0 0
        %504 = vmatmul.mubr.bf16.gmra.mrb[0].mxu0 %v394
        %v505 = vpop.f32.mrb[0].mxu0
        %v506 = vadd.f32 %v360, %v505
        %v507 = vpop.f32.mrb[0].mxu0
        %v508 = vpop.f32.mrb[0].mxu0
        %v509 = vadd.f32 %v360, %v508
        %v510 = vpop.f32.mrb[0].mxu0
        %511 = vmatprep.mubr.bf16.mxu0 0
        %512 = vmatmul.mubr.bf16.gmra.mrb[0].mxu0 %v397
        %v513 = vpop.f32.mrb[0].mxu0
        %v514 = vadd.f32 %v360, %v513
        %v515 = vpop.f32.mrb[0].mxu0
        %v516 = vpop.f32.mrb[0].mxu0
        %v517 = vadd.f32 %v360, %v516
        %v518 = vpop.f32.mrb[0].mxu0
        %519 = vmatprep.mubr.bf16.mxu0 0
        %520 = vmatmul.mubr.bf16.gmra.mrb[0].mxu0 %v400
        %v521 = vpop.f32.mrb[0].mxu0
        %v522 = vadd.f32 %v360, %v521
        %v523 = vpop.f32.mrb[0].mxu0
        %v524 = vpop.f32.mrb[0].mxu0
        %v525 = vadd.f32 %v360, %v524
        %v526 = vpop.f32.mrb[0].mxu0
        %527 = vmatprep.mubr.bf16.mxu0 0
        %528 = vmatmul.mubr.bf16.gmra.mrb[0].mxu0 %v403
        %v529 = vpop.f32.mrb[0].mxu0
        %v530 = vadd.f32 %v360, %v529
        %v531 = vpop.f32.mrb[0].mxu0
        %v532 = vpop.f32.mrb[0].mxu0
        %v533 = vadd.f32 %v360, %v532
        %v534 = vpop.f32.mrb[0].mxu0
        %535 = vmatprep.mubr.bf16.mxu0 0
        %536 = vmatmul.mubr.bf16.gmra.mrb[0].mxu0 %v406
        %v537 = vpop.f32.mrb[0].mxu0
        %v538 = vadd.f32 %v360, %v537
        %v539 = vpop.f32.mrb[0].mxu0
        %v540 = vpop.f32.mrb[0].mxu0
        %v541 = vadd.f32 %v360, %v540
        %v542 = vpop.f32.mrb[0].mxu0
        %543 = vmatprep.mubr.bf16.mxu0 0
        %544 = vmatmul.mubr.bf16.gmra.mrb[0].mxu0 %v409
        %v545 = vpop.f32.mrb[0].mxu0
        %v546 = vadd.f32 %v360, %v545
        %v547 = vpop.f32.mrb[0].mxu0
        %v548 = vpop.f32.mrb[0].mxu0
        %v549 = vadd.f32 %v360, %v548
        %v550 = vpop.f32.mrb[0].mxu0
        %551 = vmatprep.mubr.bf16.mxu0 0
        %552 = vmatmul.mubr.bf16.gmra.mrb[0].mxu0 %v412
        %v553 = vpop.f32.mrb[0].mxu0
        %v554 = vadd.f32 %v360, %v553
        %v555 = vpop.f32.mrb[0].mxu0
        %v556 = vpop.f32.mrb[0].mxu0
        %v557 = vadd.f32 %v360, %v556
        %v558 = vpop.f32.mrb[0].mxu0
        %559 = vmatprep.mubr.bf16.mxu0 0
        %560 = vmatmul.mubr.bf16.gmra.mrb[0].mxu0 %v415
        %v561 = vpop.f32.mrb[0].mxu0
        %v562 = vadd.f32 %v360, %v561
        %v563 = vpop.f32.mrb[0].mxu0
        %v564 = vpop.f32.mrb[0].mxu0
        %v565 = vadd.f32 %v360, %v564
        %v566 = vpop.f32.mrb[0].mxu0
        %567 = vmatprep.mubr.bf16.mxu0 0
        %568 = vmatmul.mubr.bf16.gmra.mrb[0].mxu0 %v418
        %v569 = vpop.f32.mrb[0].mxu0
        %v570 = vadd.f32 %v360, %v569
        %v571 = vpop.f32.mrb[0].mxu0
        %v572 = vpop.f32.mrb[0].mxu0
        %v573 = vadd.f32 %v360, %v572
        %v574 = vpop.f32.mrb[0].mxu0
        %575 = vmatprep.mubr.bf16.mxu0 0
        %576 = vmatmul.mubr.bf16.gmra.mrb[0].mxu0 %v421
        %v577 = vpop.f32.mrb[0].mxu0
        %v578 = vadd.f32 %v360, %v577
        %v579 = vpop.f32.mrb[0].mxu0
        %v580 = vpop.f32.mrb[0].mxu0
        %v581 = vadd.f32 %v360, %v580
        %v582 = vpop.f32.mrb[0].mxu0
        %583 = vdwg.mxu0
        %v584 = vmax.f32 %v458, 0.0
        %v585 = vmax.f32 %v461, 0.0
        %v586 = vmax.f32 %v466, 0.0
        %v587 = vmax.f32 %v469, 0.0
        %v588 = vmax.f32 %v474, 0.0
        %v589 = vmax.f32 %v477, 0.0
        %v590 = vmax.f32 %v482, 0.0
        %v591 = vmax.f32 %v485, 0.0
        %v592 = vmax.f32 %v490, 0.0
        %v593 = vmax.f32 %v493, 0.0
        %v594 = vmax.f32 %v498, 0.0
        %v595 = vmax.f32 %v501, 0.0
        %v596 = vmax.f32 %v506, 0.0
        %v597 = vmax.f32 %v509, 0.0
        %v598 = vmax.f32 %v514, 0.0
        %v599 = vmax.f32 %v517, 0.0
        %v600 = vmax.f32 %v522, 0.0
        %v601 = vmax.f32 %v525, 0.0
        %v602 = vmax.f32 %v530, 0.0
        %v603 = vmax.f32 %v533, 0.0
        %v604 = vmax.f32 %v538, 0.0
        %v605 = vmax.f32 %v541, 0.0
        %v606 = vmax.f32 %v546, 0.0
        %v607 = vmax.f32 %v549, 0.0
        %v608 = vmax.f32 %v554, 0.0
        %v609 = vmax.f32 %v557, 0.0
        %v610 = vmax.f32 %v562, 0.0
        %v611 = vmax.f32 %v565, 0.0
        %v612 = vmax.f32 %v570, 0.0
        %v613 = vmax.f32 %v573, 0.0
        %v614 = vmax.f32 %v578, 0.0
        %v615 = vmax.f32 %v581, 0.0
        %v616 = vpack.c.bf16 %v585, %v584
        %v617 = vpack.c.bf16 %v587, %v586
        %v618 = vpack.c.bf16 %v589, %v588
        %v619 = vpack.c.bf16 %v591, %v590
        %v620 = vpack.c.bf16 %v593, %v592
        %v621 = vpack.c.bf16 %v595, %v594
        %v622 = vpack.c.bf16 %v597, %v596
        %v623 = vpack.c.bf16 %v599, %v598
        %v624 = vpack.c.bf16 %v601, %v600
        %v625 = vpack.c.bf16 %v603, %v602
        %v626 = vpack.c.bf16 %v605, %v604
        %v627 = vpack.c.bf16 %v607, %v606
        %v628 = vpack.c.bf16 %v609, %v608
        %v629 = vpack.c.bf16 %v611, %v610
        %v630 = vpack.c.bf16 %v613, %v612
        %v631 = vpack.c.bf16 %v615, %v614
        %v632 = vld [vmem:[%s3] sm:$0xf]
        %v633 = vld [vmem:[%s3 + $0x4] sm:$0xf]
        %v634 = vld [vmem:[%s3 + $0x8] sm:$0xf]
        %v635 = vld [vmem:[%s3 + $0xc] sm:$0xf]
        %v636 = vld [vmem:[%s3 + $0x10] sm:$0xf]
        %v637 = vld [vmem:[%s3 + $0x14] sm:$0xf]
        %v638 = vld [vmem:[%s3 + $0x18] sm:$0xf]
        %v639 = vld [vmem:[%s3 + $0x1c] sm:$0xf]
        %v640 = vld [vmem:[%s3 + $0x20] sm:$0xf]
        %v641 = vld [vmem:[%s3 + $0x24] sm:$0xf]
        %v642 = vld [vmem:[%s3 + $0x28] sm:$0xf]
        %v643 = vld [vmem:[%s3 + $0x2c] sm:$0xf]
        %v644 = vld [vmem:[%s3 + $0x30] sm:$0xf]
        %v645 = vld [vmem:[%s3 + $0x34] sm:$0xf]
        %v646 = vld [vmem:[%s3 + $0x38] sm:$0xf]
        %v647 = vld [vmem:[%s3 + $0x3c] sm:$0xf]
        %v648 = vld [vmem:[%s4] sm:$0x1]
        %v650 = vlaneseq
        %v651 = vshrl.u32 %v650, 7
        %v652 = vsub.s32 0, %v651
        %v653 = vrot.slane %v648, %v652
        %v671 = vunpack.c.l.b16 %v632
        %v672 = vunpack.c.l.b16 %v633
        %v673 = vunpack.c.l.b16 %v634
        %v674 = vunpack.c.l.b16 %v635
        %v675 = vunpack.c.l.b16 %v636
        %v676 = vunpack.c.l.b16 %v637
        %v677 = vunpack.c.l.b16 %v638
        %v678 = vunpack.c.l.b16 %v639
        %v679 = vunpack.c.l.b16 %v640
        %v680 = vunpack.c.l.b16 %v641
        %v681 = vunpack.c.l.b16 %v642
        %v682 = vunpack.c.l.b16 %v643
        %v683 = vunpack.c.l.b16 %v644
        %v684 = vunpack.c.l.b16 %v645
        %v685 = vunpack.c.l.b16 %v646
        %v686 = vunpack.c.l.b16 %v647
        %v687 = vpack.c.b16 %v672, %v671
        %v688 = vpack.c.b16 %v674, %v673
        %v689 = vpack.c.b16 %v676, %v675
        %v690 = vpack.c.b16 %v678, %v677
        %v691 = vpack.c.b16 %v680, %v679
        %v692 = vpack.c.b16 %v682, %v681
        %v693 = vpack.c.b16 %v684, %v683
        %v694 = vpack.c.b16 %v686, %v685
        %703 = vmatprep.subr.bf16.mxu0 0
        %704 = vmatpush1.bf16.msra.mxu0 %v687
        %705 = vmatprep.subr.bf16.mxu0 0
        %706 = vmatpush1.bf16.msra.mxu0 %v688
        %707 = vmatprep.subr.bf16.mxu0 0
        %708 = vmatpush1.bf16.msra.mxu0 %v689
        %709 = vmatprep.subr.bf16.mxu0 0
        %710 = vmatpush1.bf16.msra.mxu0 %v690
        %711 = vmatprep.subr.bf16.mxu0 0
        %712 = vmatpush1.bf16.msra.mxu0 %v691
        %713 = vmatprep.subr.bf16.mxu0 0
        %714 = vmatpush1.bf16.msra.mxu0 %v692
        %715 = vmatprep.subr.bf16.mxu0 0
        %716 = vmatpush1.bf16.msra.mxu0 %v693
        %717 = vmatprep.subr.bf16.mxu0 0
        %718 = vmatpush1.bf16.msra.mxu0 %v694
        %719 = vmatprep.subr.bf16.mxu0 0
        %720 = vmatpush1.bf16.msra.mxu0 0
        %721 = vmatprep.subr.bf16.mxu0 0
        %722 = vmatpush1.bf16.msra.mxu0 0
        %723 = vmatprep.subr.bf16.mxu0 0
        %724 = vmatpush1.bf16.msra.mxu0 0
        %725 = vmatprep.subr.bf16.mxu0 0
        %726 = vmatpush1.bf16.msra.mxu0 0
        %727 = vmatprep.subr.bf16.mxu0 0
        %728 = vmatpush1.bf16.msra.mxu0 0
        %729 = vmatprep.subr.bf16.mxu0 0
        %730 = vmatpush1.bf16.msra.mxu0 0
        %731 = vmatprep.subr.bf16.mxu0 0
        %732 = vmatpush1.bf16.msra.mxu0 0
        %733 = vmatprep.subr.bf16.mxu0 0
        %734 = vmatpush1.bf16.msra.mxu0 0
        %735 = vmatprep.mubr.bf16.mxu0 0
        %736 = vmatmul.mubr.bf16.gmra.mrb[0].mxu0 %v616
        %v737 = vpop.f32.mrb[0].mxu0
        %v738 = vadd.f32 %v653, %v737
        %v739 = vpop.f32.mrb[0].mxu0
        %v740 = vpop.f32.mrb[0].mxu0
        %v741 = vadd.f32 %v653, %v740
        %v742 = vpop.f32.mrb[0].mxu0
        %743 = vmatprep.mubr.bf16.mxu0 0
        %744 = vmatmul.mubr.bf16.gmra.mrb[0].mxu0 %v617
        %v745 = vpop.f32.mrb[0].mxu0
        %v746 = vadd.f32 %v653, %v745
        %v747 = vpop.f32.mrb[0].mxu0
        %v748 = vpop.f32.mrb[0].mxu0
        %v749 = vadd.f32 %v653, %v748
        %v750 = vpop.f32.mrb[0].mxu0
        %751 = vmatprep.mubr.bf16.mxu0 0
        %752 = vmatmul.mubr.bf16.gmra.mrb[0].mxu0 %v618
        %v753 = vpop.f32.mrb[0].mxu0
        %v754 = vadd.f32 %v653, %v753
        %v755 = vpop.f32.mrb[0].mxu0
        %v756 = vpop.f32.mrb[0].mxu0
        %v757 = vadd.f32 %v653, %v756
        %v758 = vpop.f32.mrb[0].mxu0
        %759 = vmatprep.mubr.bf16.mxu0 0
        %760 = vmatmul.mubr.bf16.gmra.mrb[0].mxu0 %v619
        %v761 = vpop.f32.mrb[0].mxu0
        %v762 = vadd.f32 %v653, %v761
        %v763 = vpop.f32.mrb[0].mxu0
        %v764 = vpop.f32.mrb[0].mxu0
        %v765 = vadd.f32 %v653, %v764
        %v766 = vpop.f32.mrb[0].mxu0
        %767 = vmatprep.mubr.bf16.mxu0 0
        %768 = vmatmul.mubr.bf16.gmra.mrb[0].mxu0 %v620
        %v769 = vpop.f32.mrb[0].mxu0
        %v770 = vadd.f32 %v653, %v769
        %v771 = vpop.f32.mrb[0].mxu0
        %v772 = vpop.f32.mrb[0].mxu0
        %v773 = vadd.f32 %v653, %v772
        %v774 = vpop.f32.mrb[0].mxu0
        %775 = vmatprep.mubr.bf16.mxu0 0
        %776 = vmatmul.mubr.bf16.gmra.mrb[0].mxu0 %v621
        %v777 = vpop.f32.mrb[0].mxu0
        %v778 = vadd.f32 %v653, %v777
        %v779 = vpop.f32.mrb[0].mxu0
        %v780 = vpop.f32.mrb[0].mxu0
        %v781 = vadd.f32 %v653, %v780
        %v782 = vpop.f32.mrb[0].mxu0
        %783 = vmatprep.mubr.bf16.mxu0 0
        %784 = vmatmul.mubr.bf16.gmra.mrb[0].mxu0 %v622
        %v785 = vpop.f32.mrb[0].mxu0
        %v786 = vadd.f32 %v653, %v785
        %v787 = vpop.f32.mrb[0].mxu0
        %v788 = vpop.f32.mrb[0].mxu0
        %v789 = vadd.f32 %v653, %v788
        %v790 = vpop.f32.mrb[0].mxu0
        %791 = vmatprep.mubr.bf16.mxu0 0
        %792 = vmatmul.mubr.bf16.gmra.mrb[0].mxu0 %v623
        %v793 = vpop.f32.mrb[0].mxu0
        %v794 = vadd.f32 %v653, %v793
        %v795 = vpop.f32.mrb[0].mxu0
        %v796 = vpop.f32.mrb[0].mxu0
        %v797 = vadd.f32 %v653, %v796
        %v798 = vpop.f32.mrb[0].mxu0
        %799 = vmatprep.mubr.bf16.mxu0 0
        %800 = vmatmul.mubr.bf16.gmra.mrb[0].mxu0 %v624
        %v801 = vpop.f32.mrb[0].mxu0
        %v802 = vadd.f32 %v653, %v801
        %v803 = vpop.f32.mrb[0].mxu0
        %v804 = vpop.f32.mrb[0].mxu0
        %v805 = vadd.f32 %v653, %v804
        %v806 = vpop.f32.mrb[0].mxu0
        %807 = vmatprep.mubr.bf16.mxu0 0
        %808 = vmatmul.mubr.bf16.gmra.mrb[0].mxu0 %v625
        %v809 = vpop.f32.mrb[0].mxu0
        %v810 = vadd.f32 %v653, %v809
        %v811 = vpop.f32.mrb[0].mxu0
        %v812 = vpop.f32.mrb[0].mxu0
        %v813 = vadd.f32 %v653, %v812
        %v814 = vpop.f32.mrb[0].mxu0
        %815 = vmatprep.mubr.bf16.mxu0 0
        %816 = vmatmul.mubr.bf16.gmra.mrb[0].mxu0 %v626
        %v817 = vpop.f32.mrb[0].mxu0
        %v818 = vadd.f32 %v653, %v817
        %v819 = vpop.f32.mrb[0].mxu0
        %v820 = vpop.f32.mrb[0].mxu0
        %v821 = vadd.f32 %v653, %v820
        %v822 = vpop.f32.mrb[0].mxu0
        %823 = vmatprep.mubr.bf16.mxu0 0
        %824 = vmatmul.mubr.bf16.gmra.mrb[0].mxu0 %v627
        %v825 = vpop.f32.mrb[0].mxu0
        %v826 = vadd.f32 %v653, %v825
        %v827 = vpop.f32.mrb[0].mxu0
        %v828 = vpop.f32.mrb[0].mxu0
        %v829 = vadd.f32 %v653, %v828
        %v830 = vpop.f32.mrb[0].mxu0
        %831 = vmatprep.mubr.bf16.mxu0 0
        %832 = vmatmul.mubr.bf16.gmra.mrb[0].mxu0 %v628
        %v833 = vpop.f32.mrb[0].mxu0
        %v834 = vadd.f32 %v653, %v833
        %v835 = vpop.f32.mrb[0].mxu0
        %v836 = vpop.f32.mrb[0].mxu0
        %v837 = vadd.f32 %v653, %v836
        %v838 = vpop.f32.mrb[0].mxu0
        %839 = vmatprep.mubr.bf16.mxu0 0
        %840 = vmatmul.mubr.bf16.gmra.mrb[0].mxu0 %v629
        %v841 = vpop.f32.mrb[0].mxu0
        %v842 = vadd.f32 %v653, %v841
        %v843 = vpop.f32.mrb[0].mxu0
        %v844 = vpop.f32.mrb[0].mxu0
        %v845 = vadd.f32 %v653, %v844
        %v846 = vpop.f32.mrb[0].mxu0
        %847 = vmatprep.mubr.bf16.mxu0 0
        %848 = vmatmul.mubr.bf16.gmra.mrb[0].mxu0 %v630
        %v849 = vpop.f32.mrb[0].mxu0
        %v850 = vadd.f32 %v653, %v849
        %v851 = vpop.f32.mrb[0].mxu0
        %v852 = vpop.f32.mrb[0].mxu0
        %v853 = vadd.f32 %v653, %v852
        %v854 = vpop.f32.mrb[0].mxu0
        %855 = vmatprep.mubr.bf16.mxu0 0
        %856 = vmatmul.mubr.bf16.gmra.mrb[0].mxu0 %v631
        %v857 = vpop.f32.mrb[0].mxu0
        %v858 = vadd.f32 %v653, %v857
        %v859 = vpop.f32.mrb[0].mxu0
        %v860 = vpop.f32.mrb[0].mxu0
        %v861 = vadd.f32 %v653, %v860
        %v862 = vpop.f32.mrb[0].mxu0
        %863 = vdwg.mxu0
        %v864 = vmax.f32 %v738, 0.0
        %v865 = vmax.f32 %v741, 0.0
        %v866 = vmax.f32 %v746, 0.0
        %v867 = vmax.f32 %v749, 0.0
        %v868 = vmax.f32 %v754, 0.0
        %v869 = vmax.f32 %v757, 0.0
        %v870 = vmax.f32 %v762, 0.0
        %v871 = vmax.f32 %v765, 0.0
        %v872 = vmax.f32 %v770, 0.0
        %v873 = vmax.f32 %v773, 0.0
        %v874 = vmax.f32 %v778, 0.0
        %v875 = vmax.f32 %v781, 0.0
        %v876 = vmax.f32 %v786, 0.0
        %v877 = vmax.f32 %v789, 0.0
        %v878 = vmax.f32 %v794, 0.0
        %v879 = vmax.f32 %v797, 0.0
        %v880 = vmax.f32 %v802, 0.0
        %v881 = vmax.f32 %v805, 0.0
        %v882 = vmax.f32 %v810, 0.0
        %v883 = vmax.f32 %v813, 0.0
        %v884 = vmax.f32 %v818, 0.0
        %v885 = vmax.f32 %v821, 0.0
        %v886 = vmax.f32 %v826, 0.0
        %v887 = vmax.f32 %v829, 0.0
        %v888 = vmax.f32 %v834, 0.0
        %v889 = vmax.f32 %v837, 0.0
        %v890 = vmax.f32 %v842, 0.0
        %v891 = vmax.f32 %v845, 0.0
        %v892 = vmax.f32 %v850, 0.0
        %v893 = vmax.f32 %v853, 0.0
        %v894 = vmax.f32 %v858, 0.0
        %v895 = vmax.f32 %v861, 0.0
        %v896 = vld [vmem:[%s5] sm:$0x1]
        %v898 = vlaneseq
        %v899 = vshrl.u32 %v898, 7
        %v900 = vsub.s32 0, %v899
        %v901 = vrot.slane %v896, %v900
        %v903 = vmul.f32 %v864, %v901
        %v904 = vmul.f32 %v865, %v901
        %v905 = vmul.f32 %v866, %v901
        %v906 = vmul.f32 %v867, %v901
        %v907 = vmul.f32 %v868, %v901
        %v908 = vmul.f32 %v869, %v901
        %v909 = vmul.f32 %v870, %v901
        %v910 = vmul.f32 %v871, %v901
        %v911 = vmul.f32 %v872, %v901
        %v912 = vmul.f32 %v873, %v901
        %v913 = vmul.f32 %v874, %v901
        %v914 = vmul.f32 %v875, %v901
        %v915 = vmul.f32 %v876, %v901
        %v916 = vmul.f32 %v877, %v901
        %v917 = vmul.f32 %v878, %v901
        %v918 = vmul.f32 %v879, %v901
        %v919 = vmul.f32 %v880, %v901
        %v920 = vmul.f32 %v881, %v901
        %v921 = vmul.f32 %v882, %v901
        %v922 = vmul.f32 %v883, %v901
        %v923 = vmul.f32 %v884, %v901
        %v924 = vmul.f32 %v885, %v901
        %v925 = vmul.f32 %v886, %v901
        %v926 = vmul.f32 %v887, %v901
        %v927 = vmul.f32 %v888, %v901
        %v928 = vmul.f32 %v889, %v901
        %v929 = vmul.f32 %v890, %v901
        %v930 = vmul.f32 %v891, %v901
        %v931 = vmul.f32 %v892, %v901
        %v932 = vmul.f32 %v893, %v901
        %v933 = vmul.f32 %v894, %v901
        %v934 = vmul.f32 %v895, %v901
        %935 = vadd.xlane.f32.xlu0 %v903
        %v936 = vpop.xlane.xlu0 %935
        %937 = vadd.xlane.f32.xlu0 %v904
        %v938 = vpop.xlane.xlu0 %937
        %939 = vadd.xlane.f32.xlu0 %v905
        %v940 = vpop.xlane.xlu0 %939
        %941 = vadd.xlane.f32.xlu0 %v906
        %v942 = vpop.xlane.xlu0 %941
        %943 = vadd.xlane.f32.xlu0 %v907
        %v944 = vpop.xlane.xlu0 %943
        %945 = vadd.xlane.f32.xlu0 %v908
        %v946 = vpop.xlane.xlu0 %945
        %947 = vadd.xlane.f32.xlu0 %v909
        %v948 = vpop.xlane.xlu0 %947
        %949 = vadd.xlane.f32.xlu0 %v910
        %v950 = vpop.xlane.xlu0 %949
        %951 = vadd.xlane.f32.xlu0 %v911
        %v952 = vpop.xlane.xlu0 %951
        %953 = vadd.xlane.f32.xlu0 %v912
        %v954 = vpop.xlane.xlu0 %953
        %955 = vadd.xlane.f32.xlu0 %v913
        %v956 = vpop.xlane.xlu0 %955
        %957 = vadd.xlane.f32.xlu0 %v914
        %v958 = vpop.xlane.xlu0 %957
        %959 = vadd.xlane.f32.xlu0 %v915
        %v960 = vpop.xlane.xlu0 %959
        %961 = vadd.xlane.f32.xlu0 %v916
        %v962 = vpop.xlane.xlu0 %961
        %963 = vadd.xlane.f32.xlu0 %v917
        %v964 = vpop.xlane.xlu0 %963
        %965 = vadd.xlane.f32.xlu0 %v918
        %v966 = vpop.xlane.xlu0 %965
        %967 = vadd.xlane.f32.xlu0 %v919
        %v968 = vpop.xlane.xlu0 %967
        %969 = vadd.xlane.f32.xlu0 %v920
        %v970 = vpop.xlane.xlu0 %969
        %971 = vadd.xlane.f32.xlu0 %v921
        %v972 = vpop.xlane.xlu0 %971
        %973 = vadd.xlane.f32.xlu0 %v922
        %v974 = vpop.xlane.xlu0 %973
        %975 = vadd.xlane.f32.xlu0 %v923
        %v976 = vpop.xlane.xlu0 %975
        %977 = vadd.xlane.f32.xlu0 %v924
        %v978 = vpop.xlane.xlu0 %977
        %979 = vadd.xlane.f32.xlu0 %v925
        %v980 = vpop.xlane.xlu0 %979
        %981 = vadd.xlane.f32.xlu0 %v926
        %v982 = vpop.xlane.xlu0 %981
        %983 = vadd.xlane.f32.xlu0 %v927
        %v984 = vpop.xlane.xlu0 %983
        %985 = vadd.xlane.f32.xlu0 %v928
        %v986 = vpop.xlane.xlu0 %985
        %987 = vadd.xlane.f32.xlu0 %v929
        %v988 = vpop.xlane.xlu0 %987
        %989 = vadd.xlane.f32.xlu0 %v930
        %v990 = vpop.xlane.xlu0 %989
        %991 = vadd.xlane.f32.xlu0 %v931
        %v992 = vpop.xlane.xlu0 %991
        %993 = vadd.xlane.f32.xlu0 %v932
        %v994 = vpop.xlane.xlu0 %993
        %995 = vadd.xlane.f32.xlu0 %v933
        %v996 = vpop.xlane.xlu0 %995
        %997 = vadd.xlane.f32.xlu0 %v934
        %v998 = vpop.xlane.xlu0 %997
        %v999 = vld [vmem:[#allocation2] sm:$0x1]
        %v1001 = vlaneseq
        %v1002 = vshrl.u32 %v1001, 7
        %v1003 = vsub.s32 0, %v1002
        %v1004 = vrot.slane %v999, %v1003
        %v1006 = vadd.f32 %v936, %v1004
        %v1007 = vadd.f32 %v938, %v1004
        %v1008 = vadd.f32 %v940, %v1004
        %v1009 = vadd.f32 %v942, %v1004
        %v1010 = vadd.f32 %v944, %v1004
        %v1011 = vadd.f32 %v946, %v1004
        %v1012 = vadd.f32 %v948, %v1004
        %v1013 = vadd.f32 %v950, %v1004
        %v1014 = vadd.f32 %v952, %v1004
        %v1015 = vadd.f32 %v954, %v1004
        %v1016 = vadd.f32 %v956, %v1004
        %v1017 = vadd.f32 %v958, %v1004
        %v1018 = vadd.f32 %v960, %v1004
        %v1019 = vadd.f32 %v962, %v1004
        %v1020 = vadd.f32 %v964, %v1004
        %v1021 = vadd.f32 %v966, %v1004
        %v1022 = vadd.f32 %v968, %v1004
        %v1023 = vadd.f32 %v970, %v1004
        %v1024 = vadd.f32 %v972, %v1004
        %v1025 = vadd.f32 %v974, %v1004
        %v1026 = vadd.f32 %v976, %v1004
        %v1027 = vadd.f32 %v978, %v1004
        %v1028 = vadd.f32 %v980, %v1004
        %v1029 = vadd.f32 %v982, %v1004
        %v1030 = vadd.f32 %v984, %v1004
        %v1031 = vadd.f32 %v986, %v1004
        %v1032 = vadd.f32 %v988, %v1004
        %v1033 = vadd.f32 %v990, %v1004
        %v1034 = vadd.f32 %v992, %v1004
        %v1035 = vadd.f32 %v994, %v1004
        %v1036 = vadd.f32 %v996, %v1004
        %v1037 = vadd.f32 %v998, %v1004
        %v1038 = vxor.u32 %v1006, 2147483648
        %v1039 = vxor.u32 %v1007, 2147483648
        %v1040 = vxor.u32 %v1008, 2147483648
        %v1041 = vxor.u32 %v1009, 2147483648
        %v1042 = vxor.u32 %v1010, 2147483648
        %v1043 = vxor.u32 %v1011, 2147483648
        %v1044 = vxor.u32 %v1012, 2147483648
        %v1045 = vxor.u32 %v1013, 2147483648
        %v1046 = vxor.u32 %v1014, 2147483648
        %v1047 = vxor.u32 %v1015, 2147483648
        %v1048 = vxor.u32 %v1016, 2147483648
        %v1049 = vxor.u32 %v1017, 2147483648
        %v1050 = vxor.u32 %v1018, 2147483648
        %v1051 = vxor.u32 %v1019, 2147483648
        %v1052 = vxor.u32 %v1020, 2147483648
        %v1053 = vxor.u32 %v1021, 2147483648
        %v1054 = vxor.u32 %v1022, 2147483648
        %v1055 = vxor.u32 %v1023, 2147483648
        %v1056 = vxor.u32 %v1024, 2147483648
        %v1057 = vxor.u32 %v1025, 2147483648
        %v1058 = vxor.u32 %v1026, 2147483648
        %v1059 = vxor.u32 %v1027, 2147483648
        %v1060 = vxor.u32 %v1028, 2147483648
        %v1061 = vxor.u32 %v1029, 2147483648
        %v1062 = vxor.u32 %v1030, 2147483648
        %v1063 = vxor.u32 %v1031, 2147483648
        %v1064 = vxor.u32 %v1032, 2147483648
        %v1065 = vxor.u32 %v1033, 2147483648
        %v1066 = vxor.u32 %v1034, 2147483648
        %v1067 = vxor.u32 %v1035, 2147483648
        %v1068 = vxor.u32 %v1036, 2147483648
        %v1069 = vxor.u32 %v1037, 2147483648
        %v1070 = vmul.f32 %v1038, 1.442695
        %v1071 = vpow.pop %v1070
        %v1072 = vmul.f32 %v1039, 1.442695
        %v1073 = vpow.pop %v1072
        %v1074 = vmul.f32 %v1040, 1.442695
        %v1075 = vpow.pop %v1074
        %v1076 = vmul.f32 %v1041, 1.442695
        %v1077 = vpow.pop %v1076
        %v1078 = vmul.f32 %v1042, 1.442695
        %v1079 = vpow.pop %v1078
        %v1080 = vmul.f32 %v1043, 1.442695
        %v1081 = vpow.pop %v1080
        %v1082 = vmul.f32 %v1044, 1.442695
        %v1083 = vpow.pop %v1082
        %v1084 = vmul.f32 %v1045, 1.442695
        %v1085 = vpow.pop %v1084
        %v1086 = vmul.f32 %v1046, 1.442695
        %v1087 = vpow.pop %v1086
        %v1088 = vmul.f32 %v1047, 1.442695
        %v1089 = vpow.pop %v1088
        %v1090 = vmul.f32 %v1048, 1.442695
        %v1091 = vpow.pop %v1090
        %v1092 = vmul.f32 %v1049, 1.442695
        %v1093 = vpow.pop %v1092
        %v1094 = vmul.f32 %v1050, 1.442695
        %v1095 = vpow.pop %v1094
        %v1096 = vmul.f32 %v1051, 1.442695
        %v1097 = vpow.pop %v1096
        %v1098 = vmul.f32 %v1052, 1.442695
        %v1099 = vpow.pop %v1098
        %v1100 = vmul.f32 %v1053, 1.442695
        %v1101 = vpow.pop %v1100
        %v1102 = vmul.f32 %v1054, 1.442695
        %v1103 = vpow.pop %v1102
        %v1104 = vmul.f32 %v1055, 1.442695
        %v1105 = vpow.pop %v1104
        %v1106 = vmul.f32 %v1056, 1.442695
        %v1107 = vpow.pop %v1106
        %v1108 = vmul.f32 %v1057, 1.442695
        %v1109 = vpow.pop %v1108
        %v1110 = vmul.f32 %v1058, 1.442695
        %v1111 = vpow.pop %v1110
        %v1112 = vmul.f32 %v1059, 1.442695
        %v1113 = vpow.pop %v1112
        %v1114 = vmul.f32 %v1060, 1.442695
        %v1115 = vpow.pop %v1114
        %v1116 = vmul.f32 %v1061, 1.442695
        %v1117 = vpow.pop %v1116
        %v1118 = vmul.f32 %v1062, 1.442695
        %v1119 = vpow.pop %v1118
        %v1120 = vmul.f32 %v1063, 1.442695
        %v1121 = vpow.pop %v1120
        %v1122 = vmul.f32 %v1064, 1.442695
        %v1123 = vpow.pop %v1122
        %v1124 = vmul.f32 %v1065, 1.442695
        %v1125 = vpow.pop %v1124
        %v1126 = vmul.f32 %v1066, 1.442695
        %v1127 = vpow.pop %v1126
        %v1128 = vmul.f32 %v1067, 1.442695
        %v1129 = vpow.pop %v1128
        %v1130 = vmul.f32 %v1068, 1.442695
        %v1131 = vpow.pop %v1130
        %v1132 = vmul.f32 %v1069, 1.442695
        %v1133 = vpow.pop %v1132
        %v1134 = vadd.f32 %v1071, 1.0
        %v1135 = vadd.f32 %v1073, 1.0
        %v1136 = vadd.f32 %v1075, 1.0
        %v1137 = vadd.f32 %v1077, 1.0
        %v1138 = vadd.f32 %v1079, 1.0
        %v1139 = vadd.f32 %v1081, 1.0
        %v1140 = vadd.f32 %v1083, 1.0
        %v1141 = vadd.f32 %v1085, 1.0
        %v1142 = vadd.f32 %v1087, 1.0
        %v1143 = vadd.f32 %v1089, 1.0
        %v1144 = vadd.f32 %v1091, 1.0
        %v1145 = vadd.f32 %v1093, 1.0
        %v1146 = vadd.f32 %v1095, 1.0
        %v1147 = vadd.f32 %v1097, 1.0
        %v1148 = vadd.f32 %v1099, 1.0
        %v1149 = vadd.f32 %v1101, 1.0
        %v1150 = vadd.f32 %v1103, 1.0
        %v1151 = vadd.f32 %v1105, 1.0
        %v1152 = vadd.f32 %v1107, 1.0
        %v1153 = vadd.f32 %v1109, 1.0
        %v1154 = vadd.f32 %v1111, 1.0
        %v1155 = vadd.f32 %v1113, 1.0
        %v1156 = vadd.f32 %v1115, 1.0
        %v1157 = vadd.f32 %v1117, 1.0
        %v1158 = vadd.f32 %v1119, 1.0
        %v1159 = vadd.f32 %v1121, 1.0
        %v1160 = vadd.f32 %v1123, 1.0
        %v1161 = vadd.f32 %v1125, 1.0
        %v1162 = vadd.f32 %v1127, 1.0
        %v1163 = vadd.f32 %v1129, 1.0
        %v1164 = vadd.f32 %v1131, 1.0
        %v1165 = vadd.f32 %v1133, 1.0
        %v1166 = vrcp.pop %v1134
        %v1167 = vmul.f32 1.0, %v1166
        %v1168 = vrcp.pop %v1135
        %v1169 = vmul.f32 1.0, %v1168
        %v1170 = vrcp.pop %v1136
        %v1171 = vmul.f32 1.0, %v1170
        %v1172 = vrcp.pop %v1137
        %v1173 = vmul.f32 1.0, %v1172
        %v1174 = vrcp.pop %v1138
        %v1175 = vmul.f32 1.0, %v1174
        %v1176 = vrcp.pop %v1139
        %v1177 = vmul.f32 1.0, %v1176
        %v1178 = vrcp.pop %v1140
        %v1179 = vmul.f32 1.0, %v1178
        %v1180 = vrcp.pop %v1141
        %v1181 = vmul.f32 1.0, %v1180
        %v1182 = vrcp.pop %v1142
        %v1183 = vmul.f32 1.0, %v1182
        %v1184 = vrcp.pop %v1143
        %v1185 = vmul.f32 1.0, %v1184
        %v1186 = vrcp.pop %v1144
        %v1187 = vmul.f32 1.0, %v1186
        %v1188 = vrcp.pop %v1145
        %v1189 = vmul.f32 1.0, %v1188
        %v1190 = vrcp.pop %v1146
        %v1191 = vmul.f32 1.0, %v1190
        %v1192 = vrcp.pop %v1147
        %v1193 = vmul.f32 1.0, %v1192
        %v1194 = vrcp.pop %v1148
        %v1195 = vmul.f32 1.0, %v1194
        %v1196 = vrcp.pop %v1149
        %v1197 = vmul.f32 1.0, %v1196
        %v1198 = vrcp.pop %v1150
        %v1199 = vmul.f32 1.0, %v1198
        %v1200 = vrcp.pop %v1151
        %v1201 = vmul.f32 1.0, %v1200
        %v1202 = vrcp.pop %v1152
        %v1203 = vmul.f32 1.0, %v1202
        %v1204 = vrcp.pop %v1153
        %v1205 = vmul.f32 1.0, %v1204
        %v1206 = vrcp.pop %v1154
        %v1207 = vmul.f32 1.0, %v1206
        %v1208 = vrcp.pop %v1155
        %v1209 = vmul.f32 1.0, %v1208
        %v1210 = vrcp.pop %v1156
        %v1211 = vmul.f32 1.0, %v1210
        %v1212 = vrcp.pop %v1157
        %v1213 = vmul.f32 1.0, %v1212
        %v1214 = vrcp.pop %v1158
        %v1215 = vmul.f32 1.0, %v1214
        %v1216 = vrcp.pop %v1159
        %v1217 = vmul.f32 1.0, %v1216
        %v1218 = vrcp.pop %v1160
        %v1219 = vmul.f32 1.0, %v1218
        %v1220 = vrcp.pop %v1161
        %v1221 = vmul.f32 1.0, %v1220
        %v1222 = vrcp.pop %v1162
        %v1223 = vmul.f32 1.0, %v1222
        %v1224 = vrcp.pop %v1163
        %v1225 = vmul.f32 1.0, %v1224
        %v1226 = vrcp.pop %v1164
        %v1227 = vmul.f32 1.0, %v1226
        %v1228 = vrcp.pop %v1165
        %v1229 = vmul.f32 1.0, %v1228
        %vm1230 = vcmask 7168
        %1231 = vst.msk [vmem:[%s282] sm:$0xff] %vm1230, %v1167
        %1232 = vst.msk [vmem:[%s282 + $0x8] sm:$0xff] %vm1230, %v1169
        %1233 = vst.msk [vmem:[%s282 + $0x10] sm:$0xff] %vm1230, %v1171
        %1234 = vst.msk [vmem:[%s282 + $0x18] sm:$0xff] %vm1230, %v1173
        %1235 = vst.msk [vmem:[%s282 + $0x20] sm:$0xff] %vm1230, %v1175
        %1236 = vst.msk [vmem:[%s282 + $0x28] sm:$0xff] %vm1230, %v1177
        %1237 = vst.msk [vmem:[%s282 + $0x30] sm:$0xff] %vm1230, %v1179
        %1238 = vst.msk [vmem:[%s282 + $0x38] sm:$0xff] %vm1230, %v1181
        %1239 = vst.msk [vmem:[%s282 + $0x40] sm:$0xff] %vm1230, %v1183
        %1240 = vst.msk [vmem:[%s282 + $0x48] sm:$0xff] %vm1230, %v1185
        %1241 = vst.msk [vmem:[%s282 + $0x50] sm:$0xff] %vm1230, %v1187
        %1242 = vst.msk [vmem:[%s282 + $0x58] sm:$0xff] %vm1230, %v1189
        %1243 = vst.msk [vmem:[%s282 + $0x60] sm:$0xff] %vm1230, %v1191
        %1244 = vst.msk [vmem:[%s282 + $0x68] sm:$0xff] %vm1230, %v1193
        %1245 = vst.msk [vmem:[%s282 + $0x70] sm:$0xff] %vm1230, %v1195
        %1246 = vst.msk [vmem:[%s282 + $0x78] sm:$0xff] %vm1230, %v1197
        %1247 = vst.msk [vmem:[%s282 + $0x80] sm:$0xff] %vm1230, %v1199
        %1248 = vst.msk [vmem:[%s282 + $0x88] sm:$0xff] %vm1230, %v1201
        %1249 = vst.msk [vmem:[%s282 + $0x90] sm:$0xff] %vm1230, %v1203
        %1250 = vst.msk [vmem:[%s282 + $0x98] sm:$0xff] %vm1230, %v1205
        %1251 = vst.msk [vmem:[%s282 + $0xa0] sm:$0xff] %vm1230, %v1207
        %1252 = vst.msk [vmem:[%s282 + $0xa8] sm:$0xff] %vm1230, %v1209
        %1253 = vst.msk [vmem:[%s282 + $0xb0] sm:$0xff] %vm1230, %v1211
        %1254 = vst.msk [vmem:[%s282 + $0xb8] sm:$0xff] %vm1230, %v1213
        %1255 = vst.msk [vmem:[%s282 + $0xc0] sm:$0xff] %vm1230, %v1215
        %1256 = vst.msk [vmem:[%s282 + $0xc8] sm:$0xff] %vm1230, %v1217
        %1257 = vst.msk [vmem:[%s282 + $0xd0] sm:$0xff] %vm1230, %v1219
        %1258 = vst.msk [vmem:[%s282 + $0xd8] sm:$0xff] %vm1230, %v1221
        %1259 = vst.msk [vmem:[%s282 + $0xe0] sm:$0xff] %vm1230, %v1223
        %1260 = vst.msk [vmem:[%s282 + $0xe8] sm:$0xff] %vm1230, %v1225
        %1261 = vst.msk [vmem:[%s282 + $0xf0] sm:$0xff] %vm1230, %v1227
        %1262 = vst.msk [vmem:[%s282 + $0xf8] sm:$0xff] %vm1230, %v1229
        %s1263 = sand.u32 %s180, 1
        %s1264 = sand.u32 %s180, 1
        %s1265 = smul.addr %s1264, 256
        %s1266 = scalar_lea.vmem [#allocation3], %s1265
        // Predicated region
        $region49: #{tpu_custom_call.1} parent=47 // pred_check
          %p1267 = pneg %p190
        $region50: #{tpu_custom_call.1} parent=47 // pred_check_branch
          %1269 = sbr.rel (%p1267) target = $region52
        $region51: #{tpu_custom_call.1} parent=47 // pred_region
          %s1270 = smul.u32 32, %s20
          %s1271 = ssub.s32 38, %s1270
          %p1272 = scmp.lt.s32.totalorder %s1271, 32
          %s1273 = scalar_select %p1272, %s1271, 32
          %s1274 = smul.u32 128, %s1273
          %p1275 = scmp.ne.s32.totalorder 0, %s1274
          %s1276 = smul.addr %s1270, 8
          %s1277 = scalar_lea.vmem %s7, %s1276
          // Predicated region
          $region53: #{tpu_custom_call.1} parent=51 // pred_check
            %p1278 = pneg %p1275
          $region54: #{tpu_custom_call.1} parent=51 // pred_check_branch
            %1280 = sbr.rel (%p1278) target = $region56
          $region55: #{tpu_custom_call.1} parent=51 // pred_region
            // Predicated region
            $region57: #{tpu_custom_call.1} parent=55 // pred_check
              _
            $region58: #{tpu_custom_call.1} parent=55 // pred_check_branch
              %1282 = sbr.rel (0) target = $region60
            $region59: #{tpu_custom_call.1} parent=55 // pred_region
              // Predicated region
              $region79: #{tpu_custom_call.1} parent=59 // pred_check
                _
              $region80: #{tpu_custom_call.1} parent=59 // pred_check_branch
                %1393 = sbr.rel (0) target = $region82
              $region81: #{tpu_custom_call.1} parent=59 // pred_region
                %s1394 = sshrl.u32 %s1273, 5
                // While loop
                $region83: #{tpu_custom_call.1} parent=81 // loop_pre_header
                  _
                $region84: #{tpu_custom_call.1} parent=81 // loop_header
                  %s1396 = sphi 0, %s1398
                  %p1397 = scmp.ge.s32.totalorder %s1396, %s1394
                  %s1401 = sphi 0, %s1470
                  %s1402 = sphi %s1266, %s1473
                  %s1403 = sphi %s1277, %s1474
                $region85: #{tpu_custom_call.1} parent=81 // loop_header_branch
                  %1400 = sbr.rel (%p1397) target = $region89
                $region86: #{tpu_custom_call.1} parent=81 // loop_body
                  %v1404 = vld [vmem:[%s1402] sm:$0xff]
                  %1405 = vst [vmem:[%s1403] sm:$0xff] %v1404
                  %v1406 = vld [vmem:[%s1402 + $0x8] sm:$0xff]
                  %1407 = vst [vmem:[%s1403 + $0x8] sm:$0xff] %v1406
                  %v1408 = vld [vmem:[%s1402 + $0x10] sm:$0xff]
                  %1409 = vst [vmem:[%s1403 + $0x10] sm:$0xff] %v1408
                  %v1410 = vld [vmem:[%s1402 + $0x18] sm:$0xff]
                  %1411 = vst [vmem:[%s1403 + $0x18] sm:$0xff] %v1410
                  %v1412 = vld [vmem:[%s1402 + $0x20] sm:$0xff]
                  %1413 = vst [vmem:[%s1403 + $0x20] sm:$0xff] %v1412
                  %v1414 = vld [vmem:[%s1402 + $0x28] sm:$0xff]
                  %1415 = vst [vmem:[%s1403 + $0x28] sm:$0xff] %v1414
                  %v1416 = vld [vmem:[%s1402 + $0x30] sm:$0xff]
                  %1417 = vst [vmem:[%s1403 + $0x30] sm:$0xff] %v1416
                  %v1418 = vld [vmem:[%s1402 + $0x38] sm:$0xff]
                  %1419 = vst [vmem:[%s1403 + $0x38] sm:$0xff] %v1418
                  %v1420 = vld [vmem:[%s1402 + $0x40] sm:$0xff]
                  %1421 = vst [vmem:[%s1403 + $0x40] sm:$0xff] %v1420
                  %v1422 = vld [vmem:[%s1402 + $0x48] sm:$0xff]
                  %1423 = vst [vmem:[%s1403 + $0x48] sm:$0xff] %v1422
                  %v1424 = vld [vmem:[%s1402 + $0x50] sm:$0xff]
                  %1425 = vst [vmem:[%s1403 + $0x50] sm:$0xff] %v1424
                  %v1426 = vld [vmem:[%s1402 + $0x58] sm:$0xff]
                  %1427 = vst [vmem:[%s1403 + $0x58] sm:$0xff] %v1426
                  %v1428 = vld [vmem:[%s1402 + $0x60] sm:$0xff]
                  %1429 = vst [vmem:[%s1403 + $0x60] sm:$0xff] %v1428
                  %v1430 = vld [vmem:[%s1402 + $0x68] sm:$0xff]
                  %1431 = vst [vmem:[%s1403 + $0x68] sm:$0xff] %v1430
                  %v1432 = vld [vmem:[%s1402 + $0x70] sm:$0xff]
                  %1433 = vst [vmem:[%s1403 + $0x70] sm:$0xff] %v1432
                  %v1434 = vld [vmem:[%s1402 + $0x78] sm:$0xff]
                  %1435 = vst [vmem:[%s1403 + $0x78] sm:$0xff] %v1434
                  %v1436 = vld [vmem:[%s1402 + $0x80] sm:$0xff]
                  %1437 = vst [vmem:[%s1403 + $0x80] sm:$0xff] %v1436
                  %v1438 = vld [vmem:[%s1402 + $0x88] sm:$0xff]
                  %1439 = vst [vmem:[%s1403 + $0x88] sm:$0xff] %v1438
                  %v1440 = vld [vmem:[%s1402 + $0x90] sm:$0xff]
                  %1441 = vst [vmem:[%s1403 + $0x90] sm:$0xff] %v1440
                  %v1442 = vld [vmem:[%s1402 + $0x98] sm:$0xff]
                  %1443 = vst [vmem:[%s1403 + $0x98] sm:$0xff] %v1442
                  %v1444 = vld [vmem:[%s1402 + $0xa0] sm:$0xff]
                  %1445 = vst [vmem:[%s1403 + $0xa0] sm:$0xff] %v1444
                  %v1446 = vld [vmem:[%s1402 + $0xa8] sm:$0xff]
                  %1447 = vst [vmem:[%s1403 + $0xa8] sm:$0xff] %v1446
                  %v1448 = vld [vmem:[%s1402 + $0xb0] sm:$0xff]
                  %1449 = vst [vmem:[%s1403 + $0xb0] sm:$0xff] %v1448
                  %v1450 = vld [vmem:[%s1402 + $0xb8] sm:$0xff]
                  %1451 = vst [vmem:[%s1403 + $0xb8] sm:$0xff] %v1450
                  %v1452 = vld [vmem:[%s1402 + $0xc0] sm:$0xff]
                  %1453 = vst [vmem:[%s1403 + $0xc0] sm:$0xff] %v1452
                  %v1454 = vld [vmem:[%s1402 + $0xc8] sm:$0xff]
                  %1455 = vst [vmem:[%s1403 + $0xc8] sm:$0xff] %v1454
                  %v1456 = vld [vmem:[%s1402 + $0xd0] sm:$0xff]
                  %1457 = vst [vmem:[%s1403 + $0xd0] sm:$0xff] %v1456
                  %v1458 = vld [vmem:[%s1402 + $0xd8] sm:$0xff]
                  %1459 = vst [vmem:[%s1403 + $0xd8] sm:$0xff] %v1458
                  %v1460 = vld [vmem:[%s1402 + $0xe0] sm:$0xff]
                  %1461 = vst [vmem:[%s1403 + $0xe0] sm:$0xff] %v1460
                  %v1462 = vld [vmem:[%s1402 + $0xe8] sm:$0xff]
                  %1463 = vst [vmem:[%s1403 + $0xe8] sm:$0xff] %v1462
                  %v1464 = vld [vmem:[%s1402 + $0xf0] sm:$0xff]
                  %1465 = vst [vmem:[%s1403 + $0xf0] sm:$0xff] %v1464
                  %v1466 = vld [vmem:[%s1402 + $0xf8] sm:$0xff]
                  %1467 = vst [vmem:[%s1403 + $0xf8] sm:$0xff] %v1466
                  %s1468 = sadd.s32 1, %s1401
                  %p1469 = scmp.ge.s32.totalorder %s1468, %s1394
                  %s1470 = scalar_select %p1469, 0, %s1468
                  %s1471 = smul.u32 %s1470, 256
                  %s1472 = smul.u32 %s1470, 256
                  %s1473 = scalar_lea.vmem %s1266, %s1471 [#allocation3]
                  %s1474 = scalar_lea.vmem %s1277, %s1472
                $region87: #{tpu_custom_call.1} parent=81 // loop_footer
                  %s1398 = sadd.s32 %s1396, 1
                $region88: #{tpu_custom_call.1} parent=81 // loop_footer_branch
                  %1395 = sbr.rel target = $region84
                $region89: #{tpu_custom_call.1} parent=81 // loop_exit
                  _
                %s1475 = sshrl.u32 %s1273, 5
                %s1476 = sand.u32 %s1273, 31
                %s1477 = smul.u32 %s1475, 32
                %s1478 = smul.u32 8, %s1477
                %s1479 = scalar_lea.vmem %s1266, %s1478 [#allocation3]
                %s1480 = smul.u32 8, %s1477
                %s1481 = scalar_lea.vmem %s1277, %s1480
                // While loop
                $region90: #{tpu_custom_call.1} parent=81 // loop_pre_header
                  _
                $region91: #{tpu_custom_call.1} parent=81 // loop_header
                  %s1483 = sphi 0, %s1485
                  %p1484 = scmp.ge.s32.totalorder %s1483, %s1476
                  %s1488 = sphi 0, %s1495
                  %s1489 = sphi %s1479, %s1498
                  %s1490 = sphi %s1481, %s1499
                $region92: #{tpu_custom_call.1} parent=81 // loop_header_branch
                  %1487 = sbr.rel (%p1484) target = $region96
                $region93: #{tpu_custom_call.1} parent=81 // loop_body
                  %v1491 = vld [vmem:[%s1489] sm:$0xff]
                  %1492 = vst [vmem:[%s1490] sm:$0xff] %v1491
                  %s1493 = sadd.s32 1, %s1488
                  %p1494 = scmp.ge.s32.totalorder %s1493, %s1476
                  %s1495 = scalar_select %p1494, 0, %s1493
                  %s1496 = smul.u32 %s1495, 8
                  %s1497 = smul.u32 %s1495, 8
                  %s1498 = scalar_lea.vmem %s1479, %s1496 [#allocation3]
                  %s1499 = scalar_lea.vmem %s1481, %s1497
                $region94: #{tpu_custom_call.1} parent=81 // loop_footer
                  %s1485 = sadd.s32 %s1483, 1
                $region95: #{tpu_custom_call.1} parent=81 // loop_footer_branch
                  %1482 = sbr.rel target = $region91
                $region96: #{tpu_custom_call.1} parent=81 // loop_exit
                  _
              $region82: #{tpu_custom_call.1} parent=59 // pred_fallthru
                _
              // Predicated region
              $region97: #{tpu_custom_call.1} parent=59 // pred_check
                _
              $region98: #{tpu_custom_call.1} parent=59 // pred_check_branch
                %1501 = sbr.rel target = $region100
              $region99: #{tpu_custom_call.1} parent=59 // pred_region
                _
              $region100: #{tpu_custom_call.1} parent=59 // pred_fallthru
                _
            $region60: #{tpu_custom_call.1} parent=55 // pred_fallthru
              _
            // Predicated region
            $region61: #{tpu_custom_call.1} parent=55 // pred_check
              _
            $region62: #{tpu_custom_call.1} parent=55 // pred_check_branch
              %1284 = sbr.rel target = $region64
            $region63: #{tpu_custom_call.1} parent=55 // pred_region
              %s1286 = sshrl.u32 %s1273, 5
              // While loop
              $region65: #{tpu_custom_call.1} parent=63 // loop_pre_header
                _
              $region66: #{tpu_custom_call.1} parent=63 // loop_header
                %s1288 = sphi 0, %s1290
                %p1289 = scmp.ge.s32.totalorder %s1288, %s1286
                %s1293 = sphi 0, %s1362
                %s1294 = sphi %s1266, %s1365
                %s1295 = sphi %s1277, %s1366
              $region67: #{tpu_custom_call.1} parent=63 // loop_header_branch
                %1292 = sbr.rel (%p1289) target = $region71
              $region68: #{tpu_custom_call.1} parent=63 // loop_body
                %v1296 = vld [vmem:[%s1294] sm:$0xff]
                %1297 = vst [vmem:[%s1295] sm:$0xff] %v1296
                %v1298 = vld [vmem:[%s1294 + $0x8] sm:$0xff]
                %1299 = vst [vmem:[%s1295 + $0x8] sm:$0xff] %v1298
                %v1300 = vld [vmem:[%s1294 + $0x10] sm:$0xff]
                %1301 = vst [vmem:[%s1295 + $0x10] sm:$0xff] %v1300
                %v1302 = vld [vmem:[%s1294 + $0x18] sm:$0xff]
                %1303 = vst [vmem:[%s1295 + $0x18] sm:$0xff] %v1302
                %v1304 = vld [vmem:[%s1294 + $0x20] sm:$0xff]
                %1305 = vst [vmem:[%s1295 + $0x20] sm:$0xff] %v1304
                %v1306 = vld [vmem:[%s1294 + $0x28] sm:$0xff]
                %1307 = vst [vmem:[%s1295 + $0x28] sm:$0xff] %v1306
                %v1308 = vld [vmem:[%s1294 + $0x30] sm:$0xff]
                %1309 = vst [vmem:[%s1295 + $0x30] sm:$0xff] %v1308
                %v1310 = vld [vmem:[%s1294 + $0x38] sm:$0xff]
                %1311 = vst [vmem:[%s1295 + $0x38] sm:$0xff] %v1310
                %v1312 = vld [vmem:[%s1294 + $0x40] sm:$0xff]
                %1313 = vst [vmem:[%s1295 + $0x40] sm:$0xff] %v1312
                %v1314 = vld [vmem:[%s1294 + $0x48] sm:$0xff]
                %1315 = vst [vmem:[%s1295 + $0x48] sm:$0xff] %v1314
                %v1316 = vld [vmem:[%s1294 + $0x50] sm:$0xff]
                %1317 = vst [vmem:[%s1295 + $0x50] sm:$0xff] %v1316
                %v1318 = vld [vmem:[%s1294 + $0x58] sm:$0xff]
                %1319 = vst [vmem:[%s1295 + $0x58] sm:$0xff] %v1318
                %v1320 = vld [vmem:[%s1294 + $0x60] sm:$0xff]
                %1321 = vst [vmem:[%s1295 + $0x60] sm:$0xff] %v1320
                %v1322 = vld [vmem:[%s1294 + $0x68] sm:$0xff]
                %1323 = vst [vmem:[%s1295 + $0x68] sm:$0xff] %v1322
                %v1324 = vld [vmem:[%s1294 + $0x70] sm:$0xff]
                %1325 = vst [vmem:[%s1295 + $0x70] sm:$0xff] %v1324
                %v1326 = vld [vmem:[%s1294 + $0x78] sm:$0xff]
                %1327 = vst [vmem:[%s1295 + $0x78] sm:$0xff] %v1326
                %v1328 = vld [vmem:[%s1294 + $0x80] sm:$0xff]
                %1329 = vst [vmem:[%s1295 + $0x80] sm:$0xff] %v1328
                %v1330 = vld [vmem:[%s1294 + $0x88] sm:$0xff]
                %1331 = vst [vmem:[%s1295 + $0x88] sm:$0xff] %v1330
                %v1332 = vld [vmem:[%s1294 + $0x90] sm:$0xff]
                %1333 = vst [vmem:[%s1295 + $0x90] sm:$0xff] %v1332
                %v1334 = vld [vmem:[%s1294 + $0x98] sm:$0xff]
                %1335 = vst [vmem:[%s1295 + $0x98] sm:$0xff] %v1334
                %v1336 = vld [vmem:[%s1294 + $0xa0] sm:$0xff]
                %1337 = vst [vmem:[%s1295 + $0xa0] sm:$0xff] %v1336
                %v1338 = vld [vmem:[%s1294 + $0xa8] sm:$0xff]
                %1339 = vst [vmem:[%s1295 + $0xa8] sm:$0xff] %v1338
                %v1340 = vld [vmem:[%s1294 + $0xb0] sm:$0xff]
                %1341 = vst [vmem:[%s1295 + $0xb0] sm:$0xff] %v1340
                %v1342 = vld [vmem:[%s1294 + $0xb8] sm:$0xff]
                %1343 = vst [vmem:[%s1295 + $0xb8] sm:$0xff] %v1342
                %v1344 = vld [vmem:[%s1294 + $0xc0] sm:$0xff]
                %1345 = vst [vmem:[%s1295 + $0xc0] sm:$0xff] %v1344
                %v1346 = vld [vmem:[%s1294 + $0xc8] sm:$0xff]
                %1347 = vst [vmem:[%s1295 + $0xc8] sm:$0xff] %v1346
                %v1348 = vld [vmem:[%s1294 + $0xd0] sm:$0xff]
                %1349 = vst [vmem:[%s1295 + $0xd0] sm:$0xff] %v1348
                %v1350 = vld [vmem:[%s1294 + $0xd8] sm:$0xff]
                %1351 = vst [vmem:[%s1295 + $0xd8] sm:$0xff] %v1350
                %v1352 = vld [vmem:[%s1294 + $0xe0] sm:$0xff]
                %1353 = vst [vmem:[%s1295 + $0xe0] sm:$0xff] %v1352
                %v1354 = vld [vmem:[%s1294 + $0xe8] sm:$0xff]
                %1355 = vst [vmem:[%s1295 + $0xe8] sm:$0xff] %v1354
                %v1356 = vld [vmem:[%s1294 + $0xf0] sm:$0xff]
                %1357 = vst [vmem:[%s1295 + $0xf0] sm:$0xff] %v1356
                %v1358 = vld [vmem:[%s1294 + $0xf8] sm:$0xff]
                %1359 = vst [vmem:[%s1295 + $0xf8] sm:$0xff] %v1358
                %s1360 = sadd.s32 1, %s1293
                %p1361 = scmp.ge.s32.totalorder %s1360, %s1286
                %s1362 = scalar_select %p1361, 0, %s1360
                %s1363 = smul.u32 %s1362, 256
                %s1364 = smul.u32 %s1362, 256
                %s1365 = scalar_lea.vmem %s1266, %s1363 [#allocation3]
                %s1366 = scalar_lea.vmem %s1277, %s1364
              $region69: #{tpu_custom_call.1} parent=63 // loop_footer
                %s1290 = sadd.s32 %s1288, 1
              $region70: #{tpu_custom_call.1} parent=63 // loop_footer_branch
                %1287 = sbr.rel target = $region66
              $region71: #{tpu_custom_call.1} parent=63 // loop_exit
                _
              %s1367 = sshrl.u32 %s1273, 5
              %s1368 = sand.u32 %s1273, 31
              %s1369 = smul.u32 %s1367, 32
              %s1370 = smul.u32 8, %s1369
              %s1371 = scalar_lea.vmem %s1266, %s1370 [#allocation3]
              %s1372 = smul.u32 8, %s1369
              %s1373 = scalar_lea.vmem %s1277, %s1372
              // While loop
              $region72: #{tpu_custom_call.1} parent=63 // loop_pre_header
                _
              $region73: #{tpu_custom_call.1} parent=63 // loop_header
                %s1375 = sphi 0, %s1377
                %p1376 = scmp.ge.s32.totalorder %s1375, %s1368
                %s1380 = sphi 0, %s1387
                %s1381 = sphi %s1371, %s1390
                %s1382 = sphi %s1373, %s1391
              $region74: #{tpu_custom_call.1} parent=63 // loop_header_branch
                %1379 = sbr.rel (%p1376) target = $region78
              $region75: #{tpu_custom_call.1} parent=63 // loop_body
                %v1383 = vld [vmem:[%s1381] sm:$0xff]
                %1384 = vst [vmem:[%s1382] sm:$0xff] %v1383
                %s1385 = sadd.s32 1, %s1380
                %p1386 = scmp.ge.s32.totalorder %s1385, %s1368
                %s1387 = scalar_select %p1386, 0, %s1385
                %s1388 = smul.u32 %s1387, 8
                %s1389 = smul.u32 %s1387, 8
                %s1390 = scalar_lea.vmem %s1371, %s1388 [#allocation3]
                %s1391 = scalar_lea.vmem %s1373, %s1389
              $region76: #{tpu_custom_call.1} parent=63 // loop_footer
                %s1377 = sadd.s32 %s1375, 1
              $region77: #{tpu_custom_call.1} parent=63 // loop_footer_branch
                %1374 = sbr.rel target = $region73
              $region78: #{tpu_custom_call.1} parent=63 // loop_exit
                _
            $region64: #{tpu_custom_call.1} parent=55 // pred_fallthru
              _
          $region56: #{tpu_custom_call.1} parent=51 // pred_fallthru
            _
          %1502 = vnop
        $region52: #{tpu_custom_call.1} parent=47 // pred_fallthru
          _
      $region48: #{tpu_custom_call.1} parent=5 // pred_fallthru
        _
      %p1503 = scmp.le.s32.totalorder 2, %s15
      // Predicated region
      $region101: #{tpu_custom_call.1} parent=5 // pred_check
        %p1504 = pneg %p1503
      $region102: #{tpu_custom_call.1} parent=5 // pred_check_branch
        %1506 = sbr.rel (%p1504) target = $region104
      $region103: #{tpu_custom_call.1} parent=5 // pred_region
        %s1507 = ssub.s32 %s15, 2
        // Predicated region
        $region105: #{tpu_custom_call.1} parent=103 // pred_check
          %p1508 = pneg %p196
        $region106: #{tpu_custom_call.1} parent=103 // pred_check_branch
          %1510 = sbr.rel (%p1508) target = $region108
        $region107: #{tpu_custom_call.1} parent=103 // pred_region
          %s1511 = sand.u32 %s181, 1
          %s1512 = sand.u32 %s181, 1
          %s1513 = smul.addr %s1512, 256
          %s1514 = scalar_lea.vmem [#allocation3], %s1513
        $region108: #{tpu_custom_call.1} parent=103 // pred_fallthru
          _
      $region104: #{tpu_custom_call.1} parent=5 // pred_fallthru
        _
    $region6: #{tpu_custom_call.1} parent=1 // loop_footer
      %s19 = sadd.s32 1, %s15
    $region7: #{tpu_custom_call.1} parent=1 // loop_footer_branch
      %14 = sbr.rel target = $region3
    $region8: #{tpu_custom_call.1} parent=1 // loop_exit
      _

</llo_original>
